<compile_context>
chip_gen: v7x
topology: tpu7x:2x2x1
jax: 0.10.0
libtpu: 0.0.40
codegen_flags: <defaults>
</compile_context>

<pallas_src>
import functools

import numpy as np
import jax
import jax.numpy as jnp
from jax.experimental import pallas as pl
from jax.experimental.pallas import tpu as pltpu


# ----------------------------------------------------------------------------
# Deterministic parameter construction (librosa-style Slaney mel filterbank,
# periodic Hamming window) -- no file I/O.
# ----------------------------------------------------------------------------
def _hz_to_mel(f):
    f = np.asarray(f, dtype=np.float64)
    f_sp = 200.0 / 3
    mels = f / f_sp
    min_log_hz = 1000.0
    min_log_mel = min_log_hz / f_sp
    logstep = np.log(6.4) / 27.0
    return np.where(f >= min_log_hz,
                    min_log_mel + np.log(np.maximum(f, 1e-10) / min_log_hz) / logstep,
                    mels)


def _mel_to_hz(m):
    m = np.asarray(m, dtype=np.float64)
    f_sp = 200.0 / 3
    freqs = f_sp * m
    min_log_hz = 1000.0
    min_log_mel = min_log_hz / f_sp
    logstep = np.log(6.4) / 27.0
    return np.where(m >= min_log_mel,
                    min_log_hz * np.exp(logstep * (m - min_log_mel)),
                    freqs)


def mel_filterbank(sample_rate, n_fft, n_mels):
    n_freqs = n_fft // 2 + 1
    fftfreqs = np.linspace(0.0, sample_rate / 2.0, n_freqs)
    mel_pts = np.linspace(_hz_to_mel(0.0), _hz_to_mel(sample_rate / 2.0), n_mels + 2)
    hz_pts = _mel_to_hz(mel_pts)
    fdiff = np.diff(hz_pts)
    ramps = hz_pts[:, None] - fftfreqs[None, :]
    weights = np.zeros((n_mels, n_freqs), dtype=np.float64)
    for i in range(n_mels):
        lower = -ramps[i] / fdiff[i]
        upper = ramps[i + 2] / fdiff[i + 1]
        weights[i] = np.maximum(0.0, np.minimum(lower, upper))
    enorm = 2.0 / (hz_pts[2:n_mels + 2] - hz_pts[:n_mels])   # slaney norm
    weights *= enorm[:, None]
    return weights.astype(np.float32)


def hamming_window_periodic(win_length):
    n = np.arange(win_length, dtype=np.float64)
    return (0.54 - 0.46 * np.cos(2.0 * np.pi * n / win_length)).astype(np.float32)


def dft_bases(n_fft, win_length):
    """Windowed real/imag DFT bases, window zero-padded to n_fft (centered),
    matching torch.stft(onesided=True)."""
    n_freq = n_fft // 2 + 1
    win = hamming_window_periodic(win_length)
    pad_l = (n_fft - win_length) // 2
    win_full = np.zeros(n_fft, dtype=np.float64)
    win_full[pad_l:pad_l + win_length] = win
    n = np.arange(n_fft, dtype=np.float64)[:, None]          # (n_fft, 1)
    f = np.arange(n_freq, dtype=np.float64)[None, :]          # (1, n_freq)
    ang = 2.0 * np.pi * n * f / n_fft
    w_real = (win_full[:, None] * np.cos(ang)).astype(np.float32)
    w_imag = (-win_full[:, None] * np.sin(ang)).astype(np.float32)
    return w_real, w_imag


def _round_up(x, m):
    return ((x + m - 1) // m) * m


def _pick_batch_tile(B, rows_per_item, target_rows=1024, max_block_rows=2048,
                     min_blocks=2):
    """Largest divisor of B reaching ~target_rows MXU rows per block while
    staying inside a VMEM-friendly row budget and (when B >= 2) keeping at
    least `min_blocks` grid blocks so v7x's two TensorCores both get work."""
    by_target = max(1, -(-target_rows // rows_per_item))      # ceil div
    by_vmem = max(1, max_block_rows // rows_per_item)
    tb = int(min(B, by_target, by_vmem))
    while B % tb:
        tb -= 1
    while B // tb < min_blocks and tb > 1:
        tb -= 1
        while B % tb:
            tb -= 1
    return tb


# ----------------------------------------------------------------------------
# Pallas kernel: framing + STFT (sum of sublane-shifted matmuls), fused
# log-magnitude, mel projection and per-utterance InstanceNorm1d.
# ----------------------------------------------------------------------------
def mel_spec_kernel(audio_ref, w_ref, mel_ref, o_ref, *,
                    batch_tile, rows_per_item, f_valid, hop, n_fft,
                    n_half, n_mels_pad, compute_dtype):
    m_rows = batch_tile * rows_per_item
    n_splits = -(-n_fft // hop)                  # 4 for n_fft=512, hop=160

    # Audio rows: row r of item t == padded_audio[t, r*hop:(r+1)*hop] (f32).
    a = audio_ref[...]                                           # (m_rows, hop)
    a_ext = jnp.concatenate(
        [a, jnp.zeros((n_splits, a.shape[1]), a.dtype)], axis=0)

    # STFT without materializing frames: frame f spans audio rows
    # f .. f+n_splits-1, so X = sum_q shift_rows(A, q) @ W[q*hop : q*hop+kq].
    # (K-splits 160/160/160/32; a few partially-filled MXU passes are far
    # cheaper than the duplicated HBM frames traffic they replace.)
    ri = jnp.zeros((m_rows, 2 * n_half), jnp.float32)
    for q in range(n_splits):
        k0 = q * hop
        kq = min(hop, n_fft - k0)
        lhs = a_ext[q:q + m_rows, :kq].astype(compute_dtype)
        ri = ri + jnp.dot(lhs, w_ref[k0:k0 + kq, :],
                          preferred_element_type=jnp.float32)

    re = ri[:, :n_half]                          # static, 128-aligned lane split
    im = ri[:, n_half:]
    # log|X| == 0.5*log(re^2 + im^2 + eps); eps ~ (1e-9)^2 keeps the
    # "+1e-9 on the magnitude" semantics while using one EUP op (no sqrt).
    logmag = 0.5 * jnp.log(re * re + im * im + 1e-18)

    # Mel projection with MXU-friendly inputs (bf16 on the fast path, f32 acc).
    mel = jnp.dot(logmag.astype(compute_dtype), mel_ref[...],
                  preferred_element_type=jnp.float32)            # (m_rows, 128)

    # InstanceNorm1d (no affine), vectorized over the batch tile: per item /
    # per mel channel, one-pass masked stats over the valid frames only.
    mel3 = mel.reshape(batch_tile, rows_per_item, n_mels_pad)
    valid = (jax.lax.broadcasted_iota(jnp.int32, (1, rows_per_item, 1), 1)
             < f_valid).astype(jnp.float32)
    inv_n = 1.0 / float(f_valid)
    mv = mel3 * valid
    mean = jnp.sum(mv, axis=1, keepdims=True) * inv_n
    ex2 = jnp.sum(mv * mel3, axis=1, keepdims=True) * inv_n
    var = jnp.maximum(ex2 - mean * mean, 0.0)
    o_ref[...] = (mel3 - mean) * jax.lax.rsqrt(var + 1e-5)


def mel_spectrogram(x, *, sample_rate=16000, n_fft=512, win_length=400,
                    hop=160, n_mels=80, coef=0.97,
                    compute_dtype=jnp.bfloat16):
    x = x.astype(jnp.float32)
    B, T = x.shape
    n_freq = n_fft // 2 + 1

    # --- pre-emphasis (reflect-pad left by 1, conv with [-coef, 1]) ----------
    xp = jnp.pad(x, ((0, 0), (1, 0)), mode="reflect")
    y = xp[:, 1:] - coef * xp[:, :-1]                         # (B, T)

    # --- torch.stft(center=True) reflect padding (XLA glue) ------------------
    pad = n_fft // 2
    yp = jnp.pad(y, ((0, 0), (pad, pad)), mode="reflect")     # (B, T + n_fft)

    n_frames = 1 + T // hop
    n_splits = -(-n_fft // hop)
    f_pad = _round_up(n_frames, 8)
    min_rows = max(f_pad + n_splits - 1, -(-(T + n_fft) // hop))
    rows_per_item = _round_up(min_rows, 8)
    l_pad = rows_per_item * hop
    assert l_pad >= T + n_fft and l_pad >= (n_frames - 1) * hop + n_fft
    yp = jnp.pad(yp, ((0, 0), (0, l_pad - (T + n_fft))))
    # Row-major reshape (free, no copy): the kernel rebuilds the overlapping
    # STFT frames from these rows, so no duplicated frames array hits HBM.
    audio = yp.reshape(B * rows_per_item, hop)                 # (B*R, hop) f32

    # --- constant weights -----------------------------------------------------
    mel_basis = mel_filterbank(sample_rate, n_fft, n_mels)     # (n_mels, n_freq)
    # DC / Nyquist bins carry exactly zero Slaney mel weight -> drop them so
    # the fused re|im STFT weight is (n_fft, 512).  Checked, with a fallback.
    drop_edges = bool(np.all(mel_basis[:, 0] == 0.0)
                      and np.all(mel_basis[:, n_freq - 1] == 0.0))
    bins = np.arange(1, n_freq - 1) if drop_edges else np.arange(n_freq)
    n_half = _round_up(len(bins), 128)           # 255 -> 256 (2 lane tiles)
    n_mels_pad = _round_up(n_mels, 128)          # 80  -> 128 (lane-dense store)

    w_real, w_imag = dft_bases(n_fft, win_length)              # (n_fft, n_freq)
    w_ri = np.zeros((n_fft, 2 * n_half), dtype=np.float32)
    w_ri[:, :len(bins)] = w_real[:, bins]
    w_ri[:, n_half:n_half + len(bins)] = w_imag[:, bins]
    w_ri = jnp.asarray(w_ri, dtype=compute_dtype)              # (512, 512)

    mel_p = np.zeros((n_half, n_mels_pad), dtype=np.float32)
    mel_p[:len(bins), :n_mels] = mel_basis[:, bins].T
    mel_p = jnp.asarray(mel_p, dtype=compute_dtype)            # (256, 128)

    # --- batch tiling: TB items per grid step -> MXU M = TB * rows_per_item --
    tb = _pick_batch_tile(B, rows_per_item)
    n_blocks = B // tb
    m_rows = tb * rows_per_item

    itemsize = jnp.dtype(compute_dtype).itemsize
    lane_w = _round_up(hop, 128)
    est = (2 * (m_rows * lane_w * 4                     # audio block (dbl buf)
                + n_fft * 2 * n_half * itemsize         # W
                + n_half * n_mels_pad * itemsize        # mel basis
                + m_rows * n_mels_pad * 4)              # output block
           + m_rows * (4 * lane_w * 4                   # shifted audio copies
                       + 3 * 2 * n_half * 4             # ri / dot partials
                       + 4 * n_mels_pad * 4))           # mel + norm temps
    try:
        vmem_cap = int(pltpu.get_tpu_info().vmem_capacity_bytes)
    except Exception:
        vmem_cap = 64 * 1024 * 1024                     # v7x-safe fallback
    vmem_limit = int(min(max(est + (8 << 20), 32 << 20), (vmem_cap * 3) // 4))

    kernel = functools.partial(
        mel_spec_kernel, batch_tile=tb, rows_per_item=rows_per_item,
        f_valid=n_frames, hop=hop, n_fft=n_fft, n_half=n_half,
        n_mels_pad=n_mels_pad, compute_dtype=compute_dtype)

    out = pl.pallas_call(
        kernel,
        out_shape=jax.ShapeDtypeStruct((B, rows_per_item, n_mels_pad),
                                       jnp.float32),
        grid_spec=pltpu.PrefetchScalarGridSpec(
            num_scalar_prefetch=0,
            grid=(n_blocks,),
            in_specs=[
                pl.BlockSpec((m_rows, hop), lambda b: (b, 0)),
                # Constant weights: same block every grid step.
                pl.BlockSpec((n_fft, 2 * n_half), lambda b: (0, 0)),
                pl.BlockSpec((n_half, n_mels_pad), lambda b: (0, 0)),
            ],
            out_specs=pl.BlockSpec((tb, rows_per_item, n_mels_pad),
                                   lambda b: (b, 0, 0)),
        ),
        compiler_params=pltpu.CompilerParams(
            dimension_semantics=("parallel",),
            vmem_limit_bytes=vmem_limit),
    )(audio, w_ri, mel_p)

    # final torch layout: (B, 1, n_frames, n_mels); drop padded rows / lanes.
    return out[:, :n_frames, :n_mels][:, None, :, :]


# ----------------------------------------------------------------------------
# Pure-JAX reference (same math).  `compute_dtype` casts the matmul inputs the
# same way the kernel does, for matched-precision validation.
# ----------------------------------------------------------------------------
def mel_spectrogram_ref(x, *, sample_rate=16000, n_fft=512, win_length=400,
                        hop=160, n_mels=80, coef=0.97,
                        compute_dtype=jnp.float32):
    x = x.astype(jnp.float32)
    B, T = x.shape
    xp = jnp.pad(x, ((0, 0), (1, 0)), mode="reflect")
    y = xp[:, 1:] - coef * xp[:, :-1]
    pad = n_fft // 2
    yp = jnp.pad(y, ((0, 0), (pad, pad)), mode="reflect")
    n_frames = 1 + T // hop
    idx = np.arange(n_frames)[:, None] * hop + np.arange(n_fft)[None, :]
    frames = yp[:, idx].astype(compute_dtype)
    w_real, w_imag = dft_bases(n_fft, win_length)
    re = jnp.einsum("bfn,nk->bfk", frames, jnp.asarray(w_real, dtype=compute_dtype),
                    preferred_element_type=jnp.float32)
    im = jnp.einsum("bfn,nk->bfk", frames, jnp.asarray(w_imag, dtype=compute_dtype),
                    preferred_element_type=jnp.float32)
    logmag = jnp.log(jnp.sqrt(re * re + im * im) + 1e-9)
    mel_basis = mel_filterbank(sample_rate, n_fft, n_mels)
    mel = jnp.einsum("bfk,mk->bfm", logmag.astype(compute_dtype),
                     jnp.asarray(mel_basis, dtype=compute_dtype),
                     preferred_element_type=jnp.float32)        # (B, F, n_mels)
    mean = jnp.mean(mel, axis=1, keepdims=True)
    var = jnp.mean((mel - mean) ** 2, axis=1, keepdims=True)
    out = (mel - mean) * jax.lax.rsqrt(var + 1e-5)
    return out[:, None, :, :]


if __name__ == "__main__":
    key = jax.random.PRNGKey(0)
    B, T = 2, 1600                      # 1600 samples -> 11 STFT frames
    x = jax.random.normal(key, (B, T), dtype=jnp.float32)
    n_frames = 1 + T // 160

    # Full-precision path vs. f32 reference.
    out_f32 = jax.block_until_ready(mel_spectrogram(x, compute_dtype=jnp.float32))
    ref_f32 = jax.block_until_ready(mel_spectrogram_ref(x, compute_dtype=jnp.float32))
    assert out_f32.shape == (B, 1, n_frames, 80), out_f32.shape
    np.testing.assert_allclose(np.asarray(out_f32), np.asarray(ref_f32),
                               rtol=1e-2, atol=1e-2)

    # bf16 MXU fast path vs. a matched-precision reference (bf16-cast matmul
    # inputs, f32 accumulation) -- bf16 is the deliberate perf trade-off.
    out_bf16 = jax.block_until_ready(mel_spectrogram(x, compute_dtype=jnp.bfloat16))
    ref_bf16 = jax.block_until_ready(mel_spectrogram_ref(x, compute_dtype=jnp.bfloat16))
    assert out_bf16.shape == (B, 1, n_frames, 80), out_bf16.shape
    np.testing.assert_allclose(np.asarray(out_bf16), np.asarray(ref_bf16),
                               rtol=3e-2, atol=3e-2)

    print("KERNEL_OK")
</pallas_src>

<mosaic_0001>
module attributes {stable_mosaic.version = 11 : i64} {
  func.func @mel_spec_kernel(%arg0: i32, %arg1: memref<24x160xf32, #tpu.memory_space<vmem>>, %arg2: memref<512x512xf32, #tpu.memory_space<vmem>>, %arg3: memref<256x128xf32, #tpu.memory_space<vmem>>, %arg4: memref<1x24x128xf32, #tpu.memory_space<vmem>>) attributes {dimension_semantics = [#tpu.dimension_semantics<parallel>], iteration_bounds = array<i64: 2>, scalar_prefetch = 0 : i64, scratch_operands = 0 : i64, tpu.core_type = #tpu.core_type<tc>, window_params = [{transform_indices = @transform_0, window_bounds = array<i64: 24, 160>}, {pipeline_mode = #tpu.pipeline_mode<synchronous>, transform_indices = @transform_1, window_bounds = array<i64: 512, 512>}, {pipeline_mode = #tpu.pipeline_mode<synchronous>, transform_indices = @transform_2, window_bounds = array<i64: 256, 128>}, {transform_indices = @transform_3, window_bounds = array<i64: 1, 24, 128>}]} {
    %c0 = arith.constant 0 : index
    %c0_0 = arith.constant 0 : index
    %0 = vector.load %arg1[%c0, %c0_0] : memref<24x160xf32, #tpu.memory_space<vmem>>, vector<24x160xf32>
    %cst = arith.constant 0.000000e+00 : f32
    %1 = vector.broadcast %cst : f32 to vector<4x160xf32>
    %2 = tpu.concatenate %0, %1 in 0 : vector<24x160xf32>, vector<4x160xf32> -> vector<28x160xf32>
    %cst_1 = arith.constant 0.000000e+00 : f32
    %3 = vector.broadcast %cst_1 : f32 to vector<24x512xf32>
    %4 = vector.extract_strided_slice %2 {offsets = [0, 0], sizes = [24, 160], strides = [1, 1]} : vector<28x160xf32> to vector<24x160xf32>
    %c0_2 = arith.constant 0 : index
    %c0_3 = arith.constant 0 : index
    %5 = vector.load %arg2[%c0_2, %c0_3] : memref<512x512xf32, #tpu.memory_space<vmem>>, vector<160x512xf32>
    %cst_4 = arith.constant dense<0.000000e+00> : vector<24x512xf32>
    %6 = tpu.matmul %4, %5, %cst_4 {dimension_numbers = #tpu.dot_dimension_numbers<[1], [0], [0], [1], [0, 0, 1, 1], [], []>} : vector<24x160xf32>, vector<160x512xf32>, vector<24x512xf32> -> vector<24x512xf32>
    %7 = arith.addf %3, %6 : vector<24x512xf32>
    %8 = vector.extract_strided_slice %2 {offsets = [1, 0], sizes = [24, 160], strides = [1, 1]} : vector<28x160xf32> to vector<24x160xf32>
    %c160 = arith.constant 160 : index
    %c0_5 = arith.constant 0 : index
    %9 = vector.load %arg2[%c160, %c0_5] : memref<512x512xf32, #tpu.memory_space<vmem>>, vector<160x512xf32>
    %cst_6 = arith.constant dense<0.000000e+00> : vector<24x512xf32>
    %10 = tpu.matmul %8, %9, %cst_6 {dimension_numbers = #tpu.dot_dimension_numbers<[1], [0], [0], [1], [0, 0, 1, 1], [], []>} : vector<24x160xf32>, vector<160x512xf32>, vector<24x512xf32> -> vector<24x512xf32>
    %11 = arith.addf %7, %10 : vector<24x512xf32>
    %12 = vector.extract_strided_slice %2 {offsets = [2, 0], sizes = [24, 160], strides = [1, 1]} : vector<28x160xf32> to vector<24x160xf32>
    %c320 = arith.constant 320 : index
    %c0_7 = arith.constant 0 : index
    %13 = vector.load %arg2[%c320, %c0_7] : memref<512x512xf32, #tpu.memory_space<vmem>>, vector<160x512xf32>
    %cst_8 = arith.constant dense<0.000000e+00> : vector<24x512xf32>
    %14 = tpu.matmul %12, %13, %cst_8 {dimension_numbers = #tpu.dot_dimension_numbers<[1], [0], [0], [1], [0, 0, 1, 1], [], []>} : vector<24x160xf32>, vector<160x512xf32>, vector<24x512xf32> -> vector<24x512xf32>
    %15 = arith.addf %11, %14 : vector<24x512xf32>
    %16 = vector.extract_strided_slice %2 {offsets = [3, 0], sizes = [24, 32], strides = [1, 1]} : vector<28x160xf32> to vector<24x32xf32>
    %c480 = arith.constant 480 : index
    %c0_9 = arith.constant 0 : index
    %17 = vector.load %arg2[%c480, %c0_9] : memref<512x512xf32, #tpu.memory_space<vmem>>, vector<32x512xf32>
    %cst_10 = arith.constant dense<0.000000e+00> : vector<24x512xf32>
    %18 = tpu.matmul %16, %17, %cst_10 {dimension_numbers = #tpu.dot_dimension_numbers<[1], [0], [0], [1], [0, 0, 1, 1], [], []>} : vector<24x32xf32>, vector<32x512xf32>, vector<24x512xf32> -> vector<24x512xf32>
    %19 = arith.addf %15, %18 : vector<24x512xf32>
    %20 = vector.extract_strided_slice %19 {offsets = [0, 0], sizes = [24, 256], strides = [1, 1]} : vector<24x512xf32> to vector<24x256xf32>
    %21 = vector.extract_strided_slice %19 {offsets = [0, 256], sizes = [24, 256], strides = [1, 1]} : vector<24x512xf32> to vector<24x256xf32>
    %22 = arith.mulf %20, %20 : vector<24x256xf32>
    %23 = arith.mulf %21, %21 : vector<24x256xf32>
    %24 = arith.addf %22, %23 : vector<24x256xf32>
    %cst_11 = arith.constant 1.000000e-18 : f32
    %25 = vector.broadcast %cst_11 : f32 to vector<24x256xf32>
    %26 = arith.addf %24, %25 : vector<24x256xf32>
    %27 = math.log %26 : vector<24x256xf32>
    %cst_12 = arith.constant 5.000000e-01 : f32
    %28 = vector.broadcast %cst_12 : f32 to vector<24x256xf32>
    %29 = arith.mulf %28, %27 : vector<24x256xf32>
    %c0_13 = arith.constant 0 : index
    %c0_14 = arith.constant 0 : index
    %30 = vector.load %arg3[%c0_13, %c0_14] : memref<256x128xf32, #tpu.memory_space<vmem>>, vector<256x128xf32>
    %cst_15 = arith.constant dense<0.000000e+00> : vector<24x128xf32>
    %31 = tpu.matmul %29, %30, %cst_15 {dimension_numbers = #tpu.dot_dimension_numbers<[1], [0], [0], [1], [0, 0, 1, 1], [], []>} : vector<24x256xf32>, vector<256x128xf32>, vector<24x128xf32> -> vector<24x128xf32>
    %32 = vector.shape_cast %31 : vector<24x128xf32> to vector<1x24x128xf32>
    %33 = tpu.iota {dimensions = array<i32: 1>} : vector<1x24x1xi32>
    %c11_i32 = arith.constant 11 : i32
    %34 = vector.broadcast %c11_i32 : i32 to vector<1x24x1xi32>
    %35 = arith.cmpi slt, %33, %34 : vector<1x24x1xi32>
    %36 = arith.extui %35 : vector<1x24x1xi1> to vector<1x24x1xi32>
    %37 = arith.sitofp %36 : vector<1x24x1xi32> to vector<1x24x1xf32>
    %38 = vector.broadcast %37 : vector<1x24x1xf32> to vector<1x24x128xf32>
    %39 = arith.mulf %32, %38 : vector<1x24x128xf32>
    %cst_16 = arith.constant dense<0.000000e+00> : vector<1x128xf32>
    %40 = vector.multi_reduction <add>, %39, %cst_16 [1] : vector<1x24x128xf32> to vector<1x128xf32>
    %41 = vector.shape_cast %40 : vector<1x128xf32> to vector<1x1x128xf32>
    %cst_17 = arith.constant 0.0909090936 : f32
    %42 = vector.broadcast %cst_17 : f32 to vector<1x1x128xf32>
    %43 = arith.mulf %41, %42 : vector<1x1x128xf32>
    %44 = arith.mulf %39, %32 : vector<1x24x128xf32>
    %cst_18 = arith.constant dense<0.000000e+00> : vector<1x128xf32>
    %45 = vector.multi_reduction <add>, %44, %cst_18 [1] : vector<1x24x128xf32> to vector<1x128xf32>
    %46 = vector.shape_cast %45 : vector<1x128xf32> to vector<1x1x128xf32>
    %cst_19 = arith.constant 0.0909090936 : f32
    %47 = vector.broadcast %cst_19 : f32 to vector<1x1x128xf32>
    %48 = arith.mulf %46, %47 : vector<1x1x128xf32>
    %49 = arith.mulf %43, %43 : vector<1x1x128xf32>
    %50 = arith.subf %48, %49 : vector<1x1x128xf32>
    %cst_20 = arith.constant 0.000000e+00 : f32
    %51 = vector.broadcast %cst_20 : f32 to vector<1x1x128xf32>
    %52 = arith.maximumf %50, %51 : vector<1x1x128xf32>
    %53 = vector.broadcast %43 : vector<1x1x128xf32> to vector<1x24x128xf32>
    %54 = arith.subf %32, %53 : vector<1x24x128xf32>
    %cst_21 = arith.constant 9.99999974E-6 : f32
    %55 = vector.broadcast %cst_21 : f32 to vector<1x1x128xf32>
    %56 = arith.addf %52, %55 : vector<1x1x128xf32>
    %57 = math.rsqrt %56 : vector<1x1x128xf32>
    %58 = vector.broadcast %57 : vector<1x1x128xf32> to vector<1x24x128xf32>
    %59 = arith.mulf %54, %58 : vector<1x24x128xf32>
    %c0_22 = arith.constant 0 : index
    %c0_23 = arith.constant 0 : index
    %c0_24 = arith.constant 0 : index
    %60 = vector.load %arg4[%c0_22, %c0_23, %c0_24] : memref<1x24x128xf32, #tpu.memory_space<vmem>>, vector<1x24x128xf32>
    tpu.vector_store %arg4[%c0_22, %c0_23, %c0_24], %59 {strides = array<i32>} : memref<1x24x128xf32, #tpu.memory_space<vmem>>, vector<1x24x128xf32>,
    return
  }
  func.func @transform_0(%arg0: i32) -> (i32, i32) {
    %c0_i32 = arith.constant 0 : i32
    %c0_i32_0 = arith.constant 0 : i32
    return %arg0, %c0_i32 : i32, i32
  }
  func.func @transform_1(%arg0: i32) -> (i32, i32) {
    %c0_i32 = arith.constant 0 : i32
    %c0_i32_0 = arith.constant 0 : i32
    %c0_i32_1 = arith.constant 0 : i32
    return %c0_i32, %c0_i32_0 : i32, i32
  }
  func.func @transform_2(%arg0: i32) -> (i32, i32) {
    %c0_i32 = arith.constant 0 : i32
    %c0_i32_0 = arith.constant 0 : i32
    %c0_i32_1 = arith.constant 0 : i32
    return %c0_i32, %c0_i32_0 : i32, i32
  }
  func.func @transform_3(%arg0: i32) -> (i32, i32, i32) {
    %c0_i32 = arith.constant 0 : i32
    %c0_i32_0 = arith.constant 0 : i32
    %c0_i32_1 = arith.constant 0 : i32
    return %arg0, %c0_i32, %c0_i32_0 : i32, i32, i32
  }
}

</mosaic_0001>

<llo_original>
// kernel: tpu_custom_call.1
$region0: #{tpu_custom_call.1}
  #allocation0 [shape = 'u32[]', space=smem, size = 0x4, offset = 0x4, fixed_abs, tag = 'smem constant byte address 0x4 - core index']
  #allocation1 [shape = 'u32[144,128]{1,0:T(1,128)}', space=vmem, size = 0x12000, scoped, tag = 'internal scratch']
  %s0 = inlined_call_operand.hbm [shape: f32[48,160], index: 0, kind: input, shape index: {}]
  %s1 = inlined_call_operand.hbm [shape: f32[512,512], index: 1, kind: input, shape index: {}]
  %s2 = inlined_call_operand.hbm [shape: f32[256,128], index: 2, kind: input, shape index: {}]
  %s3 = inlined_call_operand.hbm [shape: f32[2,24,128], index: 3, kind: output, shape index: {}]
  %s4 = sld [smem:[#allocation0]]
  $region57: #{tpu_custom_call.1} parent=0
    _
  %s6 = ssub.s32 1, %s4
  %s7 = scalar_select 0, %s6, %s4
  $region1: #{tpu_custom_call.1} parent=0
    #allocation2 [shape = 'u8[49152]{0}', space=vmem, size = 0xc000, scoped, tag = 'input window, operand 0']
    #allocation3 [shape = 's32[2]{0}', space=sflag, size = 0x8, scoped, tag = 'scoped memory for tpu_custom_call.1']
    #allocation4 [shape = 's32[2]{0}', space=sflag, size = 0x8, scoped, tag = 'scoped memory for tpu_custom_call.1']
    #allocation5 [shape = 'u8[1048576]{0}', space=vmem, size = 0x100000, scoped, tag = 'input window, operand 1, single buffered']
    #allocation6 [shape = 's32[1]{0}', space=sflag, size = 0x4, scoped, tag = 'scoped memory for tpu_custom_call.1']
    #allocation7 [shape = 'u8[131072]{0}', space=vmem, size = 0x20000, scoped, tag = 'input window, operand 2, single buffered']
    #allocation8 [shape = 'u8[24576]{0}', space=vmem, size = 0x6000, scoped, tag = 'output window, operand 0']
    %8 = vsyncpa [#allocation3], 0
    %s9 = scalar_lea.sflag [#allocation3], 1
    %10 = vsyncpa %s9, 0
    %11 = vsyncpa [#allocation6], 0
    %12 = vsyncpa [#allocation4], 0
    %s13 = scalar_lea.sflag [#allocation4], 1
    %14 = vsyncpa %s13, 0
    loop: start=0, step=1, limit=4
    $region2: #{tpu_custom_call.1} parent=1 // loop_pre_header
      _
    $region3: #{tpu_custom_call.1} parent=1 // loop_header
      %s16 = sphi 0, %s20
      %p17 = scmp.ge.s32.totalorder %s16, 4
      %s26 = sphi 0, %s28
      %s29 = sphi 0, %s26
      %s30 = sphi 0, %s29
      %s46 = sphi 0, %s30
      %s50 = sphi 0, %s50
      %s52 = sphi 0, %s50
      %s53 = sphi 0, %s52
      %s67 = sphi 0, %s53
      %s71 = sphi 0, %s71
      %s73 = sphi 0, %s71
      %s74 = sphi 0, %s73
      %s88 = sphi 0, %s74
      %s94 = sphi 0, %s96
      %s97 = sphi 0, %s94
      %s98 = sphi 0, %s97
      %s114 = sphi 0, %s98
    $region4: #{tpu_custom_call.1} parent=1 // loop_header_branch
      %19 = sbr.rel (%p17) target = $region8
    $region5: #{tpu_custom_call.1} parent=1 // loop_body
      %s21 = ssub.s32 %s16, 1
      %s22 = ssub.s32 %s16, 2
      %s23 = sadd.s32 %s16, 1
      %s24 = ssub.s32 %s16, %s23
      %p25 = scmp.eq.s32.totalorder %s24, 0
      %s27 = sadd.s32 %s26, 1
      %s28 = scalar_select %p25, %s26, %s27
      %p31 = pneg %p25
      %p32 = scmp.eq.s32.totalorder %s16, 1
      %p33 = por %p31, %p32
      %p34 = scmp.ne.s32.totalorder %s26, %s29
      %p35 = scmp.eq.s32.totalorder %s16, 0
      %p36 = por %p34, %p35
      %p37 = scmp.ne.s32.totalorder %s26, %s29
      %p38 = scmp.eq.s32.totalorder %s21, 1
      %p39 = por %p37, %p38
      %p40 = scmp.ne.s32.totalorder %s29, %s30
      %p41 = scmp.eq.s32.totalorder %s21, 0
      %p42 = por %p40, %p41
      %p43 = scmp.ne.s32.totalorder %s29, %s30
      %p44 = scmp.eq.s32.totalorder %s22, 1
      %p45 = por %p43, %p44
      %p47 = scmp.ne.s32.totalorder %s30, %s46
      %p48 = scmp.eq.s32.totalorder %s22, 0
      %p49 = por %p47, %p48
      %s51 = sadd.s32 %s50, 1
      %p54 = scmp.eq.s32.totalorder %s16, 1
      %p55 = scmp.ne.s32.totalorder %s50, %s52
      %p56 = scmp.eq.s32.totalorder %s16, 0
      %p57 = por %p55, %p56
      %p58 = scmp.ne.s32.totalorder %s50, %s52
      %p59 = scmp.eq.s32.totalorder %s21, 1
      %p60 = por %p58, %p59
      %p61 = scmp.ne.s32.totalorder %s52, %s53
      %p62 = scmp.eq.s32.totalorder %s21, 0
      %p63 = por %p61, %p62
      %p64 = scmp.ne.s32.totalorder %s52, %s53
      %p65 = scmp.eq.s32.totalorder %s22, 1
      %p66 = por %p64, %p65
      %p68 = scmp.ne.s32.totalorder %s53, %s67
      %p69 = scmp.eq.s32.totalorder %s22, 0
      %p70 = por %p68, %p69
      %s72 = sadd.s32 %s71, 1
      %p75 = scmp.eq.s32.totalorder %s16, 1
      %p76 = scmp.ne.s32.totalorder %s71, %s73
      %p77 = scmp.eq.s32.totalorder %s16, 0
      %p78 = por %p76, %p77
      %p79 = scmp.ne.s32.totalorder %s71, %s73
      %p80 = scmp.eq.s32.totalorder %s21, 1
      %p81 = por %p79, %p80
      %p82 = scmp.ne.s32.totalorder %s73, %s74
      %p83 = scmp.eq.s32.totalorder %s21, 0
      %p84 = por %p82, %p83
      %p85 = scmp.ne.s32.totalorder %s73, %s74
      %p86 = scmp.eq.s32.totalorder %s22, 1
      %p87 = por %p85, %p86
      %p89 = scmp.ne.s32.totalorder %s74, %s88
      %p90 = scmp.eq.s32.totalorder %s22, 0
      %p91 = por %p89, %p90
      %s92 = ssub.s32 %s16, %s23
      %p93 = scmp.eq.s32.totalorder %s92, 0
      %s95 = sadd.s32 %s94, 1
      %s96 = scalar_select %p93, %s94, %s95
      %p99 = pneg %p93
      %p100 = scmp.eq.s32.totalorder %s16, 1
      %p101 = por %p99, %p100
      %p102 = scmp.ne.s32.totalorder %s94, %s97
      %p103 = scmp.eq.s32.totalorder %s16, 0
      %p104 = por %p102, %p103
      %p105 = scmp.ne.s32.totalorder %s94, %s97
      %p106 = scmp.eq.s32.totalorder %s21, 1
      %p107 = por %p105, %p106
      %p108 = scmp.ne.s32.totalorder %s97, %s98
      %p109 = scmp.eq.s32.totalorder %s21, 0
      %p110 = por %p108, %p109
      %p111 = scmp.ne.s32.totalorder %s97, %s98
      %p112 = scmp.eq.s32.totalorder %s22, 1
      %p113 = por %p111, %p112
      %p115 = scmp.ne.s32.totalorder %s98, %s114
      %p116 = scmp.eq.s32.totalorder %s22, 0
      %p117 = por %p115, %p116
      %p118 = scmp.le.s32.totalorder 1, %s16
      %p119 = scmp.lt.s32.totalorder %s16, 3
      %p120 = pnand %p118, %p119
      %p121 = pneg %p120
      // Predicated region
      $region9: #{tpu_custom_call.1} parent=5 // pred_check
        _
      $region10: #{tpu_custom_call.1} parent=5 // pred_check_branch
        %123 = sbr.rel (%p120) target = $region12
      $region11: #{tpu_custom_call.1} parent=5 // pred_region
        %s124 = ssub.s32 %s16, 1
        // Predicated region
        $region13: #{tpu_custom_call.1} parent=11 // pred_check
          %p125 = pneg %p63
        $region14: #{tpu_custom_call.1} parent=11 // pred_check_branch
          %127 = sbr.rel (%p125) target = $region16
        $region15: #{tpu_custom_call.1} parent=11 // pred_region
          %s129 = ssub.s32 32768, 32768
          %130 = vsyncadd [#allocation6], %s129
          %s131 = sshll.u32 [#allocation5], 4
          %s132 = int_to_ptr.vmem [resolvable:$true] %s131
          %137 = dma.hbm_to_vmem [thread:$0]  %s1, 32768, %s132, [#allocation6], 512, 512, 32
        $region16: #{tpu_custom_call.1} parent=11 // pred_fallthru
          _
        // Predicated region
        $region17: #{tpu_custom_call.1} parent=11 // pred_check
          %p138 = pneg %p84
        $region18: #{tpu_custom_call.1} parent=11 // pred_check_branch
          %140 = sbr.rel (%p138) target = $region20
        $region19: #{tpu_custom_call.1} parent=11 // pred_region
          %s142 = ssub.s32 4096, 4096
          %143 = vsyncadd [#allocation6], %s142
          %s144 = sshll.u32 [#allocation7], 4
          %s145 = int_to_ptr.vmem [resolvable:$true] %s144
          %150 = dma.hbm_to_vmem [thread:$0]  %s2, 4096, %s145, [#allocation6], 128, 128, 8
        $region20: #{tpu_custom_call.1} parent=11 // pred_fallthru
          _
      $region12: #{tpu_custom_call.1} parent=5 // pred_fallthru
        _
      %p151 = scmp.lt.s32.totalorder %s16, 2
      // Predicated region
      $region21: #{tpu_custom_call.1} parent=5 // pred_check
        %p152 = pneg %p151
      $region22: #{tpu_custom_call.1} parent=5 // pred_check_branch
        %154 = sbr.rel (%p152) target = $region24
      $region23: #{tpu_custom_call.1} parent=5 // pred_region
        // Predicated region
        $region25: #{tpu_custom_call.1} parent=23 // pred_check
          %p155 = pneg %p36
        $region26: #{tpu_custom_call.1} parent=23 // pred_check_branch
          %157 = sbr.rel (%p155) target = $region28
        $region27: #{tpu_custom_call.1} parent=23 // pred_region
          %s158 = sand.u32 %s26, 1
          %s159 = scalar_lea.sflag [#allocation3], %s158
          %s160 = sand.u32 %s26, 1
          %s161 = smul.addr %s160, 48
          %s162 = scalar_lea.vmem [#allocation2], %s161
          %s163 = smul.u32 3, %s16
          %s165 = ssub.s32 768, 768
          %166 = vsyncadd %s159, %s165
          %s167 = smul.addr %s163, 2
          %s168 = smul.addr %s167, 128
          %s169 = scalar_lea.hbm %s0, %s168
          %s170 = sshll.u32 %s162, 4
          %s171 = int_to_ptr.vmem [resolvable:$true] %s170
          %176 = dma.hbm_to_vmem [thread:$0]  %s169, 768, %s171, %s159, 256, 256, 16
        $region28: #{tpu_custom_call.1} parent=23 // pred_fallthru
          _
      $region24: #{tpu_custom_call.1} parent=5 // pred_fallthru
        _
      %p177 = scmp.le.s32.totalorder 1, %s16
      %p178 = scmp.lt.s32.totalorder %s16, 3
      %p179 = pnand %p177, %p178
      %p180 = pneg %p179
      // Predicated region
      $region29: #{tpu_custom_call.1} parent=5 // pred_check
        _
      $region30: #{tpu_custom_call.1} parent=5 // pred_check_branch
        %182 = sbr.rel (%p179) target = $region32
      $region31: #{tpu_custom_call.1} parent=5 // pred_region
        %s183 = ssub.s32 %s16, 1
        %s184 = sand.u32 %s29, 1
        %s185 = scalar_lea.sflag [#allocation3], %s184
        %s186 = sand.u32 %s29, 1
        %s187 = smul.addr %s186, 48
        %s188 = scalar_lea.vmem [#allocation2], %s187
        // Predicated region
        $region33: #{tpu_custom_call.1} parent=31 // pred_check
          %p189 = pneg %p42
        $region34: #{tpu_custom_call.1} parent=31 // pred_check_branch
          %191 = sbr.rel (%p189) target = $region36
        $region35: #{tpu_custom_call.1} parent=31 // pred_region
          %192 = dma.done %s185, 768
        $region36: #{tpu_custom_call.1} parent=31 // pred_fallthru
          _
        // Predicated region
        $region37: #{tpu_custom_call.1} parent=31 // pred_check
          %p193 = pneg %p63
        $region38: #{tpu_custom_call.1} parent=31 // pred_check_branch
          %195 = sbr.rel (%p193) target = $region40
        $region39: #{tpu_custom_call.1} parent=31 // pred_region
          %196 = dma.done [#allocation6], 32768
        $region40: #{tpu_custom_call.1} parent=31 // pred_fallthru
          _
        // Predicated region
        $region41: #{tpu_custom_call.1} parent=31 // pred_check
          %p197 = pneg %p84
        $region42: #{tpu_custom_call.1} parent=31 // pred_check_branch
          %199 = sbr.rel (%p197) target = $region44
        $region43: #{tpu_custom_call.1} parent=31 // pred_region
          %200 = dma.done [#allocation6], 4096
        $region44: #{tpu_custom_call.1} parent=31 // pred_fallthru
          _
        %s201 = sand.u32 %s29, 1
        %s202 = scalar_lea.sflag [#allocation3], %s201
        %s203 = sand.u32 %s29, 1
        %s204 = smul.addr %s203, 48
        %s205 = scalar_lea.vmem [#allocation2], %s204
        %p206 = pneg %p42
        %p207 = pneg %p39
        %p208 = pneg %p63
        %p209 = pneg %p60
        %p210 = pneg %p84
        %p211 = pneg %p81
        %p212 = pneg %p110
        %p213 = pneg %p107
        %s214 = sand.u32 %s97, 1
        %s215 = scalar_lea.sflag [#allocation4], %s214
        %s216 = sand.u32 %s97, 1
        %s217 = smul.addr %s216, 24
        %s218 = scalar_lea.vmem [#allocation8], %s217
        %s219 = smul.u32 3, %s21
        %v220 = vld [vmem:[%s188] sm:$0xff]
        %v221 = vld [vmem:[%s188 + $0x8] sm:$0xff]
        %v222 = vld [vmem:[%s188 + $0x10] sm:$0xff]
        %v223 = vld [vmem:[%s188 + $0x18] sm:$0xff]
        %v224 = vld [vmem:[%s188 + $0x20] sm:$0xff]
        %v225 = vld [vmem:[%s188 + $0x28] sm:$0xff]
        %v226 = vld [vmem:[#allocation5] sm:$0xff]
        %v227 = vld [vmem:[#allocation5 + $0x8] sm:$0xff]
        %v228 = vld [vmem:[#allocation5 + $0x10] sm:$0xff]
        %v229 = vld [vmem:[#allocation5 + $0x18] sm:$0xff]
        %v230 = vld [vmem:[#allocation5 + $0x20] sm:$0xff]
        %v231 = vld [vmem:[#allocation5 + $0x28] sm:$0xff]
        %v232 = vld [vmem:[#allocation5 + $0x30] sm:$0xff]
        %v233 = vld [vmem:[#allocation5 + $0x38] sm:$0xff]
        %v234 = vld [vmem:[#allocation5 + $0x40] sm:$0xff]
        %v235 = vld [vmem:[#allocation5 + $0x48] sm:$0xff]
        %v236 = vld [vmem:[#allocation5 + $0x50] sm:$0xff]
        %v237 = vld [vmem:[#allocation5 + $0x58] sm:$0xff]
        %v238 = vld [vmem:[#allocation5 + $0x60] sm:$0xff]
        %v239 = vld [vmem:[#allocation5 + $0x68] sm:$0xff]
        %v240 = vld [vmem:[#allocation5 + $0x70] sm:$0xff]
        %v241 = vld [vmem:[#allocation5 + $0x78] sm:$0xff]
        %v242 = vld [vmem:[#allocation5 + $0x80] sm:$0xff]
        %v243 = vld [vmem:[#allocation5 + $0x88] sm:$0xff]
        %v244 = vld [vmem:[#allocation5 + $0x90] sm:$0xff]
        %v245 = vld [vmem:[#allocation5 + $0x98] sm:$0xff]
        %v246 = vld [vmem:[#allocation5 + $0xa0] sm:$0xff]
        %v247 = vld [vmem:[#allocation5 + $0xa8] sm:$0xff]
        %v248 = vld [vmem:[#allocation5 + $0xb0] sm:$0xff]
        %v249 = vld [vmem:[#allocation5 + $0xb8] sm:$0xff]
        %v250 = vld [vmem:[#allocation5 + $0xc0] sm:$0xff]
        %v251 = vld [vmem:[#allocation5 + $0xc8] sm:$0xff]
        %v252 = vld [vmem:[#allocation5 + $0xd0] sm:$0xff]
        %v253 = vld [vmem:[#allocation5 + $0xd8] sm:$0xff]
        %v254 = vld [vmem:[#allocation5 + $0xe0] sm:$0xff]
        %v255 = vld [vmem:[#allocation5 + $0xe8] sm:$0xff]
        %v256 = vld [vmem:[#allocation5 + $0xf0] sm:$0xff]
        %v257 = vld [vmem:[#allocation5 + $0xf8] sm:$0xff]
        %v258 = vld [vmem:[#allocation5 + $0x100] sm:$0xff]
        %v259 = vld [vmem:[#allocation5 + $0x108] sm:$0xff]
        %v260 = vld [vmem:[#allocation5 + $0x110] sm:$0xff]
        %v261 = vld [vmem:[#allocation5 + $0x118] sm:$0xff]
        %v262 = vld [vmem:[#allocation5 + $0x120] sm:$0xff]
        %v263 = vld [vmem:[#allocation5 + $0x128] sm:$0xff]
        %v264 = vld [vmem:[#allocation5 + $0x130] sm:$0xff]
        %v265 = vld [vmem:[#allocation5 + $0x138] sm:$0xff]
        %v266 = vld [vmem:[#allocation5 + $0x140] sm:$0xff]
        %v267 = vld [vmem:[#allocation5 + $0x148] sm:$0xff]
        %v268 = vld [vmem:[#allocation5 + $0x150] sm:$0xff]
        %v269 = vld [vmem:[#allocation5 + $0x158] sm:$0xff]
        %v270 = vld [vmem:[#allocation5 + $0x160] sm:$0xff]
        %v271 = vld [vmem:[#allocation5 + $0x168] sm:$0xff]
        %v272 = vld [vmem:[#allocation5 + $0x170] sm:$0xff]
        %v273 = vld [vmem:[#allocation5 + $0x178] sm:$0xff]
        %v274 = vld [vmem:[#allocation5 + $0x180] sm:$0xff]
        %v275 = vld [vmem:[#allocation5 + $0x188] sm:$0xff]
        %v276 = vld [vmem:[#allocation5 + $0x190] sm:$0xff]
        %v277 = vld [vmem:[#allocation5 + $0x198] sm:$0xff]
        %v278 = vld [vmem:[#allocation5 + $0x1a0] sm:$0xff]
        %v279 = vld [vmem:[#allocation5 + $0x1a8] sm:$0xff]
        %v280 = vld [vmem:[#allocation5 + $0x1b0] sm:$0xff]
        %v281 = vld [vmem:[#allocation5 + $0x1b8] sm:$0xff]
        %v282 = vld [vmem:[#allocation5 + $0x1c0] sm:$0xff]
        %v283 = vld [vmem:[#allocation5 + $0x1c8] sm:$0xff]
        %v284 = vld [vmem:[#allocation5 + $0x1d0] sm:$0xff]
        %v285 = vld [vmem:[#allocation5 + $0x1d8] sm:$0xff]
        %v286 = vld [vmem:[#allocation5 + $0x1e0] sm:$0xff]
        %v287 = vld [vmem:[#allocation5 + $0x1e8] sm:$0xff]
        %v288 = vld [vmem:[#allocation5 + $0x1f0] sm:$0xff]
        %v289 = vld [vmem:[#allocation5 + $0x1f8] sm:$0xff]
        %v290 = vld [vmem:[#allocation5 + $0x200] sm:$0xff]
        %v291 = vld [vmem:[#allocation5 + $0x208] sm:$0xff]
        %v292 = vld [vmem:[#allocation5 + $0x210] sm:$0xff]
        %v293 = vld [vmem:[#allocation5 + $0x218] sm:$0xff]
        %v294 = vld [vmem:[#allocation5 + $0x220] sm:$0xff]
        %v295 = vld [vmem:[#allocation5 + $0x228] sm:$0xff]
        %v296 = vld [vmem:[#allocation5 + $0x230] sm:$0xff]
        %v297 = vld [vmem:[#allocation5 + $0x238] sm:$0xff]
        %v298 = vld [vmem:[#allocation5 + $0x240] sm:$0xff]
        %v299 = vld [vmem:[#allocation5 + $0x248] sm:$0xff]
        %v300 = vld [vmem:[#allocation5 + $0x250] sm:$0xff]
        %v301 = vld [vmem:[#allocation5 + $0x258] sm:$0xff]
        %v302 = vld [vmem:[#allocation5 + $0x260] sm:$0xff]
        %v303 = vld [vmem:[#allocation5 + $0x268] sm:$0xff]
        %v304 = vld [vmem:[#allocation5 + $0x270] sm:$0xff]
        %v305 = vld [vmem:[#allocation5 + $0x278] sm:$0xff]
        %v306 = vld [vmem:[#allocation5 + $0x280] sm:$0xff]
        %v307 = vld [vmem:[#allocation5 + $0x288] sm:$0xff]
        %v308 = vld [vmem:[#allocation5 + $0x290] sm:$0xff]
        %v309 = vld [vmem:[#allocation5 + $0x298] sm:$0xff]
        %v310 = vld [vmem:[#allocation5 + $0x2a0] sm:$0xff]
        %v311 = vld [vmem:[#allocation5 + $0x2a8] sm:$0xff]
        %v312 = vld [vmem:[#allocation5 + $0x2b0] sm:$0xff]
        %v313 = vld [vmem:[#allocation5 + $0x2b8] sm:$0xff]
        %v314 = vld [vmem:[#allocation5 + $0x2c0] sm:$0xff]
        %v315 = vld [vmem:[#allocation5 + $0x2c8] sm:$0xff]
        %v316 = vld [vmem:[#allocation5 + $0x2d0] sm:$0xff]
        %v317 = vld [vmem:[#allocation5 + $0x2d8] sm:$0xff]
        %v318 = vld [vmem:[#allocation5 + $0x2e0] sm:$0xff]
        %v319 = vld [vmem:[#allocation5 + $0x2e8] sm:$0xff]
        %v320 = vld [vmem:[#allocation5 + $0x2f0] sm:$0xff]
        %v321 = vld [vmem:[#allocation5 + $0x2f8] sm:$0xff]
        %v322 = vld [vmem:[#allocation5 + $0x300] sm:$0xff]
        %v323 = vld [vmem:[#allocation5 + $0x308] sm:$0xff]
        %v324 = vld [vmem:[#allocation5 + $0x310] sm:$0xff]
        %v325 = vld [vmem:[#allocation5 + $0x318] sm:$0xff]
        %v326 = vld [vmem:[#allocation5 + $0x320] sm:$0xff]
        %v327 = vld [vmem:[#allocation5 + $0x328] sm:$0xff]
        %v328 = vld [vmem:[#allocation5 + $0x330] sm:$0xff]
        %v329 = vld [vmem:[#allocation5 + $0x338] sm:$0xff]
        %v330 = vld [vmem:[#allocation5 + $0x340] sm:$0xff]
        %v331 = vld [vmem:[#allocation5 + $0x348] sm:$0xff]
        %v332 = vld [vmem:[#allocation5 + $0x350] sm:$0xff]
        %v333 = vld [vmem:[#allocation5 + $0x358] sm:$0xff]
        %v334 = vld [vmem:[#allocation5 + $0x360] sm:$0xff]
        %v335 = vld [vmem:[#allocation5 + $0x368] sm:$0xff]
        %v336 = vld [vmem:[#allocation5 + $0x370] sm:$0xff]
        %v337 = vld [vmem:[#allocation5 + $0x378] sm:$0xff]
        %v338 = vld [vmem:[#allocation5 + $0x380] sm:$0xff]
        %v339 = vld [vmem:[#allocation5 + $0x388] sm:$0xff]
        %v340 = vld [vmem:[#allocation5 + $0x390] sm:$0xff]
        %v341 = vld [vmem:[#allocation5 + $0x398] sm:$0xff]
        %v342 = vld [vmem:[#allocation5 + $0x3a0] sm:$0xff]
        %v343 = vld [vmem:[#allocation5 + $0x3a8] sm:$0xff]
        %v344 = vld [vmem:[#allocation5 + $0x3b0] sm:$0xff]
        %v345 = vld [vmem:[#allocation5 + $0x3b8] sm:$0xff]
        %v346 = vld [vmem:[#allocation5 + $0x3c0] sm:$0xff]
        %v347 = vld [vmem:[#allocation5 + $0x3c8] sm:$0xff]
        %v348 = vld [vmem:[#allocation5 + $0x3d0] sm:$0xff]
        %v349 = vld [vmem:[#allocation5 + $0x3d8] sm:$0xff]
        %v350 = vld [vmem:[#allocation5 + $0x3e0] sm:$0xff]
        %v351 = vld [vmem:[#allocation5 + $0x3e8] sm:$0xff]
        %v352 = vld [vmem:[#allocation5 + $0x3f0] sm:$0xff]
        %v353 = vld [vmem:[#allocation5 + $0x3f8] sm:$0xff]
        %v354 = vld [vmem:[#allocation5 + $0x400] sm:$0xff]
        %v355 = vld [vmem:[#allocation5 + $0x408] sm:$0xff]
        %v356 = vld [vmem:[#allocation5 + $0x410] sm:$0xff]
        %v357 = vld [vmem:[#allocation5 + $0x418] sm:$0xff]
        %v358 = vld [vmem:[#allocation5 + $0x420] sm:$0xff]
        %v359 = vld [vmem:[#allocation5 + $0x428] sm:$0xff]
        %v360 = vld [vmem:[#allocation5 + $0x430] sm:$0xff]
        %v361 = vld [vmem:[#allocation5 + $0x438] sm:$0xff]
        %v362 = vld [vmem:[#allocation5 + $0x440] sm:$0xff]
        %v363 = vld [vmem:[#allocation5 + $0x448] sm:$0xff]
        %v364 = vld [vmem:[#allocation5 + $0x450] sm:$0xff]
        %v365 = vld [vmem:[#allocation5 + $0x458] sm:$0xff]
        %v366 = vld [vmem:[#allocation5 + $0x460] sm:$0xff]
        %v367 = vld [vmem:[#allocation5 + $0x468] sm:$0xff]
        %v368 = vld [vmem:[#allocation5 + $0x470] sm:$0xff]
        %v369 = vld [vmem:[#allocation5 + $0x478] sm:$0xff]
        %v370 = vld [vmem:[#allocation5 + $0x480] sm:$0xff]
        %v371 = vld [vmem:[#allocation5 + $0x488] sm:$0xff]
        %v372 = vld [vmem:[#allocation5 + $0x490] sm:$0xff]
        %v373 = vld [vmem:[#allocation5 + $0x498] sm:$0xff]
        %v374 = vld [vmem:[#allocation5 + $0x4a0] sm:$0xff]
        %v375 = vld [vmem:[#allocation5 + $0x4a8] sm:$0xff]
        %v376 = vld [vmem:[#allocation5 + $0x4b0] sm:$0xff]
        %v377 = vld [vmem:[#allocation5 + $0x4b8] sm:$0xff]
        %v378 = vld [vmem:[#allocation5 + $0x4c0] sm:$0xff]
        %v379 = vld [vmem:[#allocation5 + $0x4c8] sm:$0xff]
        %v380 = vld [vmem:[#allocation5 + $0x4d0] sm:$0xff]
        %v381 = vld [vmem:[#allocation5 + $0x4d8] sm:$0xff]
        %v382 = vld [vmem:[#allocation5 + $0x4e0] sm:$0xff]
        %v383 = vld [vmem:[#allocation5 + $0x4e8] sm:$0xff]
        %v384 = vld [vmem:[#allocation5 + $0x4f0] sm:$0xff]
        %v385 = vld [vmem:[#allocation5 + $0x4f8] sm:$0xff]
        %vm393 = vcmask 1046528
        %v394 = vrot.slane %v220, 1
        %v395 = vrot.slane %v222, 1
        %v396 = vsel %vm393, %v394, %v395
        %v397 = vrot.slane %v221, 1
        %v398 = vrot.slane %v223, 1
        %v399 = vsel %vm393, %v397, %v398
        %v400 = vrot.slane %v224, 1
        %v401 = vsel %vm393, %v395, %v400
        %v402 = vrot.slane %v225, 1
        %v403 = vsel %vm393, %v398, %v402
        %v404 = vrot.slane 0.0, 1
        %v405 = vsel %vm393, %v400, %v404
        %v406 = vsel %vm393, %v402, %v404
        %vm410 = vcmask 261120
        %v411 = vsel %vm410, %v399, 0
        %v413 = vsel %vm410, %v403, 0
        %v415 = vsel %vm410, %v406, 0
        %417 = vmatprep.subr.mxu0 %v307
        %418 = vmatpush1.msra.mxu0 %v306
        %419 = vmatprep.subr.mxu0 %v311
        %420 = vmatpush1.msra.mxu0 %v310
        %421 = vmatprep.subr.mxu0 %v315
        %422 = vmatpush1.msra.mxu0 %v314
        %423 = vmatprep.subr.mxu0 %v319
        %424 = vmatpush1.msra.mxu0 %v318
        %425 = vmatprep.subr.mxu0 %v323
        %426 = vmatpush1.msra.mxu0 %v322
        %427 = vmatprep.subr.mxu0 %v327
        %428 = vmatpush1.msra.mxu0 %v326
        %429 = vmatprep.subr.mxu0 %v331
        %430 = vmatpush1.msra.mxu0 %v330
        %431 = vmatprep.subr.mxu0 %v335
        %432 = vmatpush1.msra.mxu0 %v334
        %433 = vmatprep.subr.mxu0 %v339
        %434 = vmatpush1.msra.mxu0 %v338
        %435 = vmatprep.subr.mxu0 %v343
        %436 = vmatpush1.msra.mxu0 %v342
        %437 = vmatprep.subr.mxu0 %v347
        %438 = vmatpush1.msra.mxu0 %v346
        %439 = vmatprep.subr.mxu0 %v351
        %440 = vmatpush1.msra.mxu0 %v350
        %441 = vmatprep.subr.mxu0 %v355
        %442 = vmatpush1.msra.mxu0 %v354
        %443 = vmatprep.subr.mxu0 %v359
        %444 = vmatpush1.msra.mxu0 %v358
        %445 = vmatprep.subr.mxu0 %v363
        %446 = vmatpush1.msra.mxu0 %v362
        %447 = vmatprep.subr.mxu0 %v367
        %448 = vmatpush1.msra.mxu0 %v366
        %449 = vmatprep.subr.mxu0 %v371
        %450 = vmatpush1.msra.mxu0 %v370
        %451 = vmatprep.subr.mxu0 %v375
        %452 = vmatpush1.msra.mxu0 %v374
        %453 = vmatprep.subr.mxu0 %v379
        %454 = vmatpush1.msra.mxu0 %v378
        %455 = vmatprep.subr.mxu0 %v383
        %456 = vmatpush1.msra.mxu0 %v382
        %457 = vmatprep.subr.mxu0 0.0
        %458 = vmatpush1.msra.mxu0 0.0
        %459 = vmatprep.subr.mxu0 0.0
        %460 = vmatpush1.msra.mxu0 0.0
        %461 = vmatprep.subr.mxu0 0.0
        %462 = vmatpush1.msra.mxu0 0.0
        %463 = vmatprep.subr.mxu0 0.0
        %464 = vmatpush1.msra.mxu0 0.0
        %465 = vmatprep.subr.mxu0 0.0
        %466 = vmatpush1.msra.mxu0 0.0
        %467 = vmatprep.subr.mxu0 0.0
        %468 = vmatpush1.msra.mxu0 0.0
        %469 = vmatprep.subr.mxu0 0.0
        %470 = vmatpush1.msra.mxu0 0.0
        %471 = vmatprep.subr.mxu0 0.0
        %472 = vmatpush1.msra.mxu0 0.0
        %473 = vmatprep.subr.mxu0 0.0
        %474 = vmatpush1.msra.mxu0 0.0
        %475 = vmatprep.subr.mxu0 0.0
        %476 = vmatpush1.msra.mxu0 0.0
        %477 = vmatprep.subr.mxu0 0.0
        %478 = vmatpush1.msra.mxu0 0.0
        %479 = vmatprep.subr.mxu0 0.0
        %480 = vmatpush1.msra.mxu0 0.0
        %481 = vmatprep.mubr.f32.mxu0 %v411
        %482 = vmatmul.mubr.f32.gmra.mrb[0].mxu0 %v396
        %v483 = vpop.f32.mrb[0].mxu0
        %v484 = vadd.f32 0.0, %v483
        %v485 = vpop.f32.mrb[0].mxu0
        %v486 = vadd.f32 0.0, %v485
        %487 = vmatprep.mubr.f32.mxu0 %v413
        %488 = vmatmul.mubr.f32.gmra.mrb[0].mxu0 %v401
        %v489 = vpop.f32.mrb[0].mxu0
        %v490 = vadd.f32 0.0, %v489
        %v491 = vpop.f32.mrb[0].mxu0
        %v492 = vadd.f32 0.0, %v491
        %493 = vmatprep.mubr.f32.mxu0 %v415
        %494 = vmatmul.mubr.f32.gmra.mrb[0].mxu0 %v405
        %v495 = vpop.f32.mrb[0].mxu0
        %v496 = vadd.f32 0.0, %v495
        %v497 = vpop.f32.mrb[0].mxu0
        %v498 = vadd.f32 0.0, %v497
        %499 = vdwg.mxu0
        %500 = vmatprep.subr.mxu0 %v309
        %501 = vmatpush1.msra.mxu0 %v308
        %502 = vmatprep.subr.mxu0 %v313
        %503 = vmatpush1.msra.mxu0 %v312
        %504 = vmatprep.subr.mxu0 %v317
        %505 = vmatpush1.msra.mxu0 %v316
        %506 = vmatprep.subr.mxu0 %v321
        %507 = vmatpush1.msra.mxu0 %v320
        %508 = vmatprep.subr.mxu0 %v325
        %509 = vmatpush1.msra.mxu0 %v324
        %510 = vmatprep.subr.mxu0 %v329
        %511 = vmatpush1.msra.mxu0 %v328
        %512 = vmatprep.subr.mxu0 %v333
        %513 = vmatpush1.msra.mxu0 %v332
        %514 = vmatprep.subr.mxu0 %v337
        %515 = vmatpush1.msra.mxu0 %v336
        %516 = vmatprep.subr.mxu0 %v341
        %517 = vmatpush1.msra.mxu0 %v340
        %518 = vmatprep.subr.mxu0 %v345
        %519 = vmatpush1.msra.mxu0 %v344
        %520 = vmatprep.subr.mxu0 %v349
        %521 = vmatpush1.msra.mxu0 %v348
        %522 = vmatprep.subr.mxu0 %v353
        %523 = vmatpush1.msra.mxu0 %v352
        %524 = vmatprep.subr.mxu0 %v357
        %525 = vmatpush1.msra.mxu0 %v356
        %526 = vmatprep.subr.mxu0 %v361
        %527 = vmatpush1.msra.mxu0 %v360
        %528 = vmatprep.subr.mxu0 %v365
        %529 = vmatpush1.msra.mxu0 %v364
        %530 = vmatprep.subr.mxu0 %v369
        %531 = vmatpush1.msra.mxu0 %v368
        %532 = vmatprep.subr.mxu0 %v373
        %533 = vmatpush1.msra.mxu0 %v372
        %534 = vmatprep.subr.mxu0 %v377
        %535 = vmatpush1.msra.mxu0 %v376
        %536 = vmatprep.subr.mxu0 %v381
        %537 = vmatpush1.msra.mxu0 %v380
        %538 = vmatprep.subr.mxu0 %v385
        %539 = vmatpush1.msra.mxu0 %v384
        %540 = vmatprep.subr.mxu0 0.0
        %541 = vmatpush1.msra.mxu0 0.0
        %542 = vmatprep.subr.mxu0 0.0
        %543 = vmatpush1.msra.mxu0 0.0
        %544 = vmatprep.subr.mxu0 0.0
        %545 = vmatpush1.msra.mxu0 0.0
        %546 = vmatprep.subr.mxu0 0.0
        %547 = vmatpush1.msra.mxu0 0.0
        %548 = vmatprep.subr.mxu0 0.0
        %549 = vmatpush1.msra.mxu0 0.0
        %550 = vmatprep.subr.mxu0 0.0
        %551 = vmatpush1.msra.mxu0 0.0
        %552 = vmatprep.subr.mxu0 0.0
        %553 = vmatpush1.msra.mxu0 0.0
        %554 = vmatprep.subr.mxu0 0.0
        %555 = vmatpush1.msra.mxu0 0.0
        %556 = vmatprep.subr.mxu0 0.0
        %557 = vmatpush1.msra.mxu0 0.0
        %558 = vmatprep.subr.mxu0 0.0
        %559 = vmatpush1.msra.mxu0 0.0
        %560 = vmatprep.subr.mxu0 0.0
        %561 = vmatpush1.msra.mxu0 0.0
        %562 = vmatprep.subr.mxu0 0.0
        %563 = vmatpush1.msra.mxu0 0.0
        %564 = vmatprep.mubr.f32.mxu0 %v411
        %565 = vmatmul.mubr.f32.gmra.mrb[0].mxu0 %v396
        %v566 = vpop.f32.mrb[0].mxu0
        %v567 = vadd.f32 0.0, %v566
        %v568 = vpop.f32.mrb[0].mxu0
        %v569 = vadd.f32 0.0, %v568
        %570 = vmatprep.mubr.f32.mxu0 %v413
        %571 = vmatmul.mubr.f32.gmra.mrb[0].mxu0 %v401
        %v572 = vpop.f32.mrb[0].mxu0
        %v573 = vadd.f32 0.0, %v572
        %v574 = vpop.f32.mrb[0].mxu0
        %v575 = vadd.f32 0.0, %v574
        %576 = vmatprep.mubr.f32.mxu0 %v415
        %577 = vmatmul.mubr.f32.gmra.mrb[0].mxu0 %v405
        %v578 = vpop.f32.mrb[0].mxu0
        %v579 = vadd.f32 0.0, %v578
        %v580 = vpop.f32.mrb[0].mxu0
        %v581 = vadd.f32 0.0, %v580
        %582 = vdwg.mxu0
        %v583 = vsel %vm410, %v221, 0
        %v585 = vsel %vm410, %v223, 0
        %v587 = vsel %vm410, %v225, 0
        %589 = vmatprep.subr.mxu0 %v227
        %590 = vmatpush1.msra.mxu0 %v226
        %591 = vmatprep.subr.mxu0 %v231
        %592 = vmatpush1.msra.mxu0 %v230
        %593 = vmatprep.subr.mxu0 %v235
        %594 = vmatpush1.msra.mxu0 %v234
        %595 = vmatprep.subr.mxu0 %v239
        %596 = vmatpush1.msra.mxu0 %v238
        %597 = vmatprep.subr.mxu0 %v243
        %598 = vmatpush1.msra.mxu0 %v242
        %599 = vmatprep.subr.mxu0 %v247
        %600 = vmatpush1.msra.mxu0 %v246
        %601 = vmatprep.subr.mxu0 %v251
        %602 = vmatpush1.msra.mxu0 %v250
        %603 = vmatprep.subr.mxu0 %v255
        %604 = vmatpush1.msra.mxu0 %v254
        %605 = vmatprep.subr.mxu0 %v259
        %606 = vmatpush1.msra.mxu0 %v258
        %607 = vmatprep.subr.mxu0 %v263
        %608 = vmatpush1.msra.mxu0 %v262
        %609 = vmatprep.subr.mxu0 %v267
        %610 = vmatpush1.msra.mxu0 %v266
        %611 = vmatprep.subr.mxu0 %v271
        %612 = vmatpush1.msra.mxu0 %v270
        %613 = vmatprep.subr.mxu0 %v275
        %614 = vmatpush1.msra.mxu0 %v274
        %615 = vmatprep.subr.mxu0 %v279
        %616 = vmatpush1.msra.mxu0 %v278
        %617 = vmatprep.subr.mxu0 %v283
        %618 = vmatpush1.msra.mxu0 %v282
        %619 = vmatprep.subr.mxu0 %v287
        %620 = vmatpush1.msra.mxu0 %v286
        %621 = vmatprep.subr.mxu0 %v291
        %622 = vmatpush1.msra.mxu0 %v290
        %623 = vmatprep.subr.mxu0 %v295
        %624 = vmatpush1.msra.mxu0 %v294
        %625 = vmatprep.subr.mxu0 %v299
        %626 = vmatpush1.msra.mxu0 %v298
        %627 = vmatprep.subr.mxu0 %v303
        %628 = vmatpush1.msra.mxu0 %v302
        %629 = vmatprep.subr.mxu0 0.0
        %630 = vmatpush1.msra.mxu0 0.0
        %631 = vmatprep.subr.mxu0 0.0
        %632 = vmatpush1.msra.mxu0 0.0
        %633 = vmatprep.subr.mxu0 0.0
        %634 = vmatpush1.msra.mxu0 0.0
        %635 = vmatprep.subr.mxu0 0.0
        %636 = vmatpush1.msra.mxu0 0.0
        %637 = vmatprep.subr.mxu0 0.0
        %638 = vmatpush1.msra.mxu0 0.0
        %639 = vmatprep.subr.mxu0 0.0
        %640 = vmatpush1.msra.mxu0 0.0
        %641 = vmatprep.subr.mxu0 0.0
        %642 = vmatpush1.msra.mxu0 0.0
        %643 = vmatprep.subr.mxu0 0.0
        %644 = vmatpush1.msra.mxu0 0.0
        %645 = vmatprep.subr.mxu0 0.0
        %646 = vmatpush1.msra.mxu0 0.0
        %647 = vmatprep.subr.mxu0 0.0
        %648 = vmatpush1.msra.mxu0 0.0
        %649 = vmatprep.subr.mxu0 0.0
        %650 = vmatpush1.msra.mxu0 0.0
        %651 = vmatprep.subr.mxu0 0.0
        %652 = vmatpush1.msra.mxu0 0.0
        %653 = vmatprep.mubr.f32.mxu0 %v583
        %654 = vmatmul.mubr.f32.gmra.mrb[0].mxu0 %v220
        %v655 = vpop.f32.mrb[0].mxu0
        %v656 = vadd.f32 %v484, %v655
        %v657 = vpop.f32.mrb[0].mxu0
        %v658 = vadd.f32 %v486, %v657
        %659 = vmatprep.mubr.f32.mxu0 %v585
        %660 = vmatmul.mubr.f32.gmra.mrb[0].mxu0 %v222
        %v661 = vpop.f32.mrb[0].mxu0
        %v662 = vadd.f32 %v490, %v661
        %v663 = vpop.f32.mrb[0].mxu0
        %v664 = vadd.f32 %v492, %v663
        %665 = vmatprep.mubr.f32.mxu0 %v587
        %666 = vmatmul.mubr.f32.gmra.mrb[0].mxu0 %v224
        %v667 = vpop.f32.mrb[0].mxu0
        %v668 = vadd.f32 %v496, %v667
        %v669 = vpop.f32.mrb[0].mxu0
        %v670 = vadd.f32 %v498, %v669
        %671 = vdwg.mxu0
        %672 = vmatprep.subr.mxu0 %v229
        %673 = vmatpush1.msra.mxu0 %v228
        %674 = vmatprep.subr.mxu0 %v233
        %675 = vmatpush1.msra.mxu0 %v232
        %676 = vmatprep.subr.mxu0 %v237
        %677 = vmatpush1.msra.mxu0 %v236
        %678 = vmatprep.subr.mxu0 %v241
        %679 = vmatpush1.msra.mxu0 %v240
        %680 = vmatprep.subr.mxu0 %v245
        %681 = vmatpush1.msra.mxu0 %v244
        %682 = vmatprep.subr.mxu0 %v249
        %683 = vmatpush1.msra.mxu0 %v248
        %684 = vmatprep.subr.mxu0 %v253
        %685 = vmatpush1.msra.mxu0 %v252
        %686 = vmatprep.subr.mxu0 %v257
        %687 = vmatpush1.msra.mxu0 %v256
        %688 = vmatprep.subr.mxu0 %v261
        %689 = vmatpush1.msra.mxu0 %v260
        %690 = vmatprep.subr.mxu0 %v265
        %691 = vmatpush1.msra.mxu0 %v264
        %692 = vmatprep.subr.mxu0 %v269
        %693 = vmatpush1.msra.mxu0 %v268
        %694 = vmatprep.subr.mxu0 %v273
        %695 = vmatpush1.msra.mxu0 %v272
        %696 = vmatprep.subr.mxu0 %v277
        %697 = vmatpush1.msra.mxu0 %v276
        %698 = vmatprep.subr.mxu0 %v281
        %699 = vmatpush1.msra.mxu0 %v280
        %700 = vmatprep.subr.mxu0 %v285
        %701 = vmatpush1.msra.mxu0 %v284
        %702 = vmatprep.subr.mxu0 %v289
        %703 = vmatpush1.msra.mxu0 %v288
        %704 = vmatprep.subr.mxu0 %v293
        %705 = vmatpush1.msra.mxu0 %v292
        %706 = vmatprep.subr.mxu0 %v297
        %707 = vmatpush1.msra.mxu0 %v296
        %708 = vmatprep.subr.mxu0 %v301
        %709 = vmatpush1.msra.mxu0 %v300
        %710 = vmatprep.subr.mxu0 %v305
        %711 = vmatpush1.msra.mxu0 %v304
        %712 = vmatprep.subr.mxu0 0.0
        %713 = vmatpush1.msra.mxu0 0.0
        %714 = vmatprep.subr.mxu0 0.0
        %715 = vmatpush1.msra.mxu0 0.0
        %716 = vmatprep.subr.mxu0 0.0
        %717 = vmatpush1.msra.mxu0 0.0
        %718 = vmatprep.subr.mxu0 0.0
        %719 = vmatpush1.msra.mxu0 0.0
        %720 = vmatprep.subr.mxu0 0.0
        %721 = vmatpush1.msra.mxu0 0.0
        %722 = vmatprep.subr.mxu0 0.0
        %723 = vmatpush1.msra.mxu0 0.0
        %724 = vmatprep.subr.mxu0 0.0
        %725 = vmatpush1.msra.mxu0 0.0
        %726 = vmatprep.subr.mxu0 0.0
        %727 = vmatpush1.msra.mxu0 0.0
        %728 = vmatprep.subr.mxu0 0.0
        %729 = vmatpush1.msra.mxu0 0.0
        %730 = vmatprep.subr.mxu0 0.0
        %731 = vmatpush1.msra.mxu0 0.0
        %732 = vmatprep.subr.mxu0 0.0
        %733 = vmatpush1.msra.mxu0 0.0
        %734 = vmatprep.subr.mxu0 0.0
        %735 = vmatpush1.msra.mxu0 0.0
        %736 = vmatprep.mubr.f32.mxu0 %v583
        %737 = vmatmul.mubr.f32.gmra.mrb[0].mxu0 %v220
        %v738 = vpop.f32.mrb[0].mxu0
        %v739 = vadd.f32 %v567, %v738
        %v740 = vpop.f32.mrb[0].mxu0
        %v741 = vadd.f32 %v569, %v740
        %742 = vmatprep.mubr.f32.mxu0 %v585
        %743 = vmatmul.mubr.f32.gmra.mrb[0].mxu0 %v222
        %v744 = vpop.f32.mrb[0].mxu0
        %v745 = vadd.f32 %v573, %v744
        %v746 = vpop.f32.mrb[0].mxu0
        %v747 = vadd.f32 %v575, %v746
        %748 = vmatprep.mubr.f32.mxu0 %v587
        %749 = vmatmul.mubr.f32.gmra.mrb[0].mxu0 %v224
        %v750 = vpop.f32.mrb[0].mxu0
        %v751 = vadd.f32 %v579, %v750
        %v752 = vpop.f32.mrb[0].mxu0
        %v753 = vadd.f32 %v581, %v752
        %754 = vdwg.mxu0
        %v755 = vld [vmem:[#allocation5 + $0x500] sm:$0xff]
        %v756 = vld [vmem:[#allocation5 + $0x508] sm:$0xff]
        %v757 = vld [vmem:[#allocation5 + $0x510] sm:$0xff]
        %v758 = vld [vmem:[#allocation5 + $0x518] sm:$0xff]
        %v759 = vld [vmem:[#allocation5 + $0x520] sm:$0xff]
        %v760 = vld [vmem:[#allocation5 + $0x528] sm:$0xff]
        %v761 = vld [vmem:[#allocation5 + $0x530] sm:$0xff]
        %v762 = vld [vmem:[#allocation5 + $0x538] sm:$0xff]
        %v763 = vld [vmem:[#allocation5 + $0x540] sm:$0xff]
        %v764 = vld [vmem:[#allocation5 + $0x548] sm:$0xff]
        %v765 = vld [vmem:[#allocation5 + $0x550] sm:$0xff]
        %v766 = vld [vmem:[#allocation5 + $0x558] sm:$0xff]
        %v767 = vld [vmem:[#allocation5 + $0x560] sm:$0xff]
        %v768 = vld [vmem:[#allocation5 + $0x568] sm:$0xff]
        %v769 = vld [vmem:[#allocation5 + $0x570] sm:$0xff]
        %v770 = vld [vmem:[#allocation5 + $0x578] sm:$0xff]
        %v771 = vld [vmem:[#allocation5 + $0x580] sm:$0xff]
        %v772 = vld [vmem:[#allocation5 + $0x588] sm:$0xff]
        %v773 = vld [vmem:[#allocation5 + $0x590] sm:$0xff]
        %v774 = vld [vmem:[#allocation5 + $0x598] sm:$0xff]
        %v775 = vld [vmem:[#allocation5 + $0x5a0] sm:$0xff]
        %v776 = vld [vmem:[#allocation5 + $0x5a8] sm:$0xff]
        %v777 = vld [vmem:[#allocation5 + $0x5b0] sm:$0xff]
        %v778 = vld [vmem:[#allocation5 + $0x5b8] sm:$0xff]
        %v779 = vld [vmem:[#allocation5 + $0x5c0] sm:$0xff]
        %v780 = vld [vmem:[#allocation5 + $0x5c8] sm:$0xff]
        %v781 = vld [vmem:[#allocation5 + $0x5d0] sm:$0xff]
        %v782 = vld [vmem:[#allocation5 + $0x5d8] sm:$0xff]
        %v783 = vld [vmem:[#allocation5 + $0x5e0] sm:$0xff]
        %v784 = vld [vmem:[#allocation5 + $0x5e8] sm:$0xff]
        %v785 = vld [vmem:[#allocation5 + $0x5f0] sm:$0xff]
        %v786 = vld [vmem:[#allocation5 + $0x5f8] sm:$0xff]
        %v787 = vld [vmem:[#allocation5 + $0x600] sm:$0xff]
        %v788 = vld [vmem:[#allocation5 + $0x608] sm:$0xff]
        %v789 = vld [vmem:[#allocation5 + $0x610] sm:$0xff]
        %v790 = vld [vmem:[#allocation5 + $0x618] sm:$0xff]
        %v791 = vld [vmem:[#allocation5 + $0x620] sm:$0xff]
        %v792 = vld [vmem:[#allocation5 + $0x628] sm:$0xff]
        %v793 = vld [vmem:[#allocation5 + $0x630] sm:$0xff]
        %v794 = vld [vmem:[#allocation5 + $0x638] sm:$0xff]
        %v795 = vld [vmem:[#allocation5 + $0x640] sm:$0xff]
        %v796 = vld [vmem:[#allocation5 + $0x648] sm:$0xff]
        %v797 = vld [vmem:[#allocation5 + $0x650] sm:$0xff]
        %v798 = vld [vmem:[#allocation5 + $0x658] sm:$0xff]
        %v799 = vld [vmem:[#allocation5 + $0x660] sm:$0xff]
        %v800 = vld [vmem:[#allocation5 + $0x668] sm:$0xff]
        %v801 = vld [vmem:[#allocation5 + $0x670] sm:$0xff]
        %v802 = vld [vmem:[#allocation5 + $0x678] sm:$0xff]
        %v803 = vld [vmem:[#allocation5 + $0x680] sm:$0xff]
        %v804 = vld [vmem:[#allocation5 + $0x688] sm:$0xff]
        %v805 = vld [vmem:[#allocation5 + $0x690] sm:$0xff]
        %v806 = vld [vmem:[#allocation5 + $0x698] sm:$0xff]
        %v807 = vld [vmem:[#allocation5 + $0x6a0] sm:$0xff]
        %v808 = vld [vmem:[#allocation5 + $0x6a8] sm:$0xff]
        %v809 = vld [vmem:[#allocation5 + $0x6b0] sm:$0xff]
        %v810 = vld [vmem:[#allocation5 + $0x6b8] sm:$0xff]
        %v811 = vld [vmem:[#allocation5 + $0x6c0] sm:$0xff]
        %v812 = vld [vmem:[#allocation5 + $0x6c8] sm:$0xff]
        %v813 = vld [vmem:[#allocation5 + $0x6d0] sm:$0xff]
        %v814 = vld [vmem:[#allocation5 + $0x6d8] sm:$0xff]
        %v815 = vld [vmem:[#allocation5 + $0x6e0] sm:$0xff]
        %v816 = vld [vmem:[#allocation5 + $0x6e8] sm:$0xff]
        %v817 = vld [vmem:[#allocation5 + $0x6f0] sm:$0xff]
        %v818 = vld [vmem:[#allocation5 + $0x6f8] sm:$0xff]
        %v819 = vld [vmem:[#allocation5 + $0x700] sm:$0xff]
        %v820 = vld [vmem:[#allocation5 + $0x708] sm:$0xff]
        %v821 = vld [vmem:[#allocation5 + $0x710] sm:$0xff]
        %v822 = vld [vmem:[#allocation5 + $0x718] sm:$0xff]
        %v823 = vld [vmem:[#allocation5 + $0x720] sm:$0xff]
        %v824 = vld [vmem:[#allocation5 + $0x728] sm:$0xff]
        %v825 = vld [vmem:[#allocation5 + $0x730] sm:$0xff]
        %v826 = vld [vmem:[#allocation5 + $0x738] sm:$0xff]
        %v827 = vld [vmem:[#allocation5 + $0x740] sm:$0xff]
        %v828 = vld [vmem:[#allocation5 + $0x748] sm:$0xff]
        %v829 = vld [vmem:[#allocation5 + $0x750] sm:$0xff]
        %v830 = vld [vmem:[#allocation5 + $0x758] sm:$0xff]
        %v831 = vld [vmem:[#allocation5 + $0x760] sm:$0xff]
        %v832 = vld [vmem:[#allocation5 + $0x768] sm:$0xff]
        %v833 = vld [vmem:[#allocation5 + $0x770] sm:$0xff]
        %v834 = vld [vmem:[#allocation5 + $0x778] sm:$0xff]
        %vm835 = vcmask 1045504
        %v836 = vrot.slane %v220, 2
        %v837 = vrot.slane %v222, 2
        %v838 = vsel %vm835, %v836, %v837
        %v839 = vrot.slane %v221, 2
        %v840 = vrot.slane %v223, 2
        %v841 = vsel %vm835, %v839, %v840
        %v842 = vrot.slane %v224, 2
        %v843 = vsel %vm835, %v837, %v842
        %v844 = vrot.slane %v225, 2
        %v845 = vsel %vm835, %v840, %v844
        %v846 = vrot.slane 0.0, 2
        %v847 = vsel %vm835, %v842, %v846
        %v848 = vsel %vm835, %v844, %v846
        %v852 = vsel %vm410, %v841, 0
        %v854 = vsel %vm410, %v845, 0
        %v856 = vsel %vm410, %v848, 0
        %858 = vmatprep.subr.mxu0 %v756
        %859 = vmatpush1.msra.mxu0 %v755
        %860 = vmatprep.subr.mxu0 %v760
        %861 = vmatpush1.msra.mxu0 %v759
        %862 = vmatprep.subr.mxu0 %v764
        %863 = vmatpush1.msra.mxu0 %v763
        %864 = vmatprep.subr.mxu0 %v768
        %865 = vmatpush1.msra.mxu0 %v767
        %866 = vmatprep.subr.mxu0 %v772
        %867 = vmatpush1.msra.mxu0 %v771
        %868 = vmatprep.subr.mxu0 %v776
        %869 = vmatpush1.msra.mxu0 %v775
        %870 = vmatprep.subr.mxu0 %v780
        %871 = vmatpush1.msra.mxu0 %v779
        %872 = vmatprep.subr.mxu0 %v784
        %873 = vmatpush1.msra.mxu0 %v783
        %874 = vmatprep.subr.mxu0 %v788
        %875 = vmatpush1.msra.mxu0 %v787
        %876 = vmatprep.subr.mxu0 %v792
        %877 = vmatpush1.msra.mxu0 %v791
        %878 = vmatprep.subr.mxu0 %v796
        %879 = vmatpush1.msra.mxu0 %v795
        %880 = vmatprep.subr.mxu0 %v800
        %881 = vmatpush1.msra.mxu0 %v799
        %882 = vmatprep.subr.mxu0 %v804
        %883 = vmatpush1.msra.mxu0 %v803
        %884 = vmatprep.subr.mxu0 %v808
        %885 = vmatpush1.msra.mxu0 %v807
        %886 = vmatprep.subr.mxu0 %v812
        %887 = vmatpush1.msra.mxu0 %v811
        %888 = vmatprep.subr.mxu0 %v816
        %889 = vmatpush1.msra.mxu0 %v815
        %890 = vmatprep.subr.mxu0 %v820
        %891 = vmatpush1.msra.mxu0 %v819
        %892 = vmatprep.subr.mxu0 %v824
        %893 = vmatpush1.msra.mxu0 %v823
        %894 = vmatprep.subr.mxu0 %v828
        %895 = vmatpush1.msra.mxu0 %v827
        %896 = vmatprep.subr.mxu0 %v832
        %897 = vmatpush1.msra.mxu0 %v831
        %898 = vmatprep.subr.mxu0 0.0
        %899 = vmatpush1.msra.mxu0 0.0
        %900 = vmatprep.subr.mxu0 0.0
        %901 = vmatpush1.msra.mxu0 0.0
        %902 = vmatprep.subr.mxu0 0.0
        %903 = vmatpush1.msra.mxu0 0.0
        %904 = vmatprep.subr.mxu0 0.0
        %905 = vmatpush1.msra.mxu0 0.0
        %906 = vmatprep.subr.mxu0 0.0
        %907 = vmatpush1.msra.mxu0 0.0
        %908 = vmatprep.subr.mxu0 0.0
        %909 = vmatpush1.msra.mxu0 0.0
        %910 = vmatprep.subr.mxu0 0.0
        %911 = vmatpush1.msra.mxu0 0.0
        %912 = vmatprep.subr.mxu0 0.0
        %913 = vmatpush1.msra.mxu0 0.0
        %914 = vmatprep.subr.mxu0 0.0
        %915 = vmatpush1.msra.mxu0 0.0
        %916 = vmatprep.subr.mxu0 0.0
        %917 = vmatpush1.msra.mxu0 0.0
        %918 = vmatprep.subr.mxu0 0.0
        %919 = vmatpush1.msra.mxu0 0.0
        %920 = vmatprep.subr.mxu0 0.0
        %921 = vmatpush1.msra.mxu0 0.0
        %922 = vmatprep.mubr.f32.mxu0 %v852
        %923 = vmatmul.mubr.f32.gmra.mrb[0].mxu0 %v838
        %v924 = vpop.f32.mrb[0].mxu0
        %v925 = vadd.f32 0.0, %v924
        %v926 = vpop.f32.mrb[0].mxu0
        %v927 = vadd.f32 0.0, %v926
        %928 = vmatprep.mubr.f32.mxu0 %v854
        %929 = vmatmul.mubr.f32.gmra.mrb[0].mxu0 %v843
        %v930 = vpop.f32.mrb[0].mxu0
        %v931 = vadd.f32 0.0, %v930
        %v932 = vpop.f32.mrb[0].mxu0
        %v933 = vadd.f32 0.0, %v932
        %934 = vmatprep.mubr.f32.mxu0 %v856
        %935 = vmatmul.mubr.f32.gmra.mrb[0].mxu0 %v847
        %v936 = vpop.f32.mrb[0].mxu0
        %v937 = vadd.f32 0.0, %v936
        %v938 = vpop.f32.mrb[0].mxu0
        %v939 = vadd.f32 0.0, %v938
        %940 = vdwg.mxu0
        %941 = vmatprep.subr.mxu0 %v758
        %942 = vmatpush1.msra.mxu0 %v757
        %943 = vmatprep.subr.mxu0 %v762
        %944 = vmatpush1.msra.mxu0 %v761
        %945 = vmatprep.subr.mxu0 %v766
        %946 = vmatpush1.msra.mxu0 %v765
        %947 = vmatprep.subr.mxu0 %v770
        %948 = vmatpush1.msra.mxu0 %v769
        %949 = vmatprep.subr.mxu0 %v774
        %950 = vmatpush1.msra.mxu0 %v773
        %951 = vmatprep.subr.mxu0 %v778
        %952 = vmatpush1.msra.mxu0 %v777
        %953 = vmatprep.subr.mxu0 %v782
        %954 = vmatpush1.msra.mxu0 %v781
        %955 = vmatprep.subr.mxu0 %v786
        %956 = vmatpush1.msra.mxu0 %v785
        %957 = vmatprep.subr.mxu0 %v790
        %958 = vmatpush1.msra.mxu0 %v789
        %959 = vmatprep.subr.mxu0 %v794
        %960 = vmatpush1.msra.mxu0 %v793
        %961 = vmatprep.subr.mxu0 %v798
        %962 = vmatpush1.msra.mxu0 %v797
        %963 = vmatprep.subr.mxu0 %v802
        %964 = vmatpush1.msra.mxu0 %v801
        %965 = vmatprep.subr.mxu0 %v806
        %966 = vmatpush1.msra.mxu0 %v805
        %967 = vmatprep.subr.mxu0 %v810
        %968 = vmatpush1.msra.mxu0 %v809
        %969 = vmatprep.subr.mxu0 %v814
        %970 = vmatpush1.msra.mxu0 %v813
        %971 = vmatprep.subr.mxu0 %v818
        %972 = vmatpush1.msra.mxu0 %v817
        %973 = vmatprep.subr.mxu0 %v822
        %974 = vmatpush1.msra.mxu0 %v821
        %975 = vmatprep.subr.mxu0 %v826
        %976 = vmatpush1.msra.mxu0 %v825
        %977 = vmatprep.subr.mxu0 %v830
        %978 = vmatpush1.msra.mxu0 %v829
        %979 = vmatprep.subr.mxu0 %v834
        %980 = vmatpush1.msra.mxu0 %v833
        %981 = vmatprep.subr.mxu0 0.0
        %982 = vmatpush1.msra.mxu0 0.0
        %983 = vmatprep.subr.mxu0 0.0
        %984 = vmatpush1.msra.mxu0 0.0
        %985 = vmatprep.subr.mxu0 0.0
        %986 = vmatpush1.msra.mxu0 0.0
        %987 = vmatprep.subr.mxu0 0.0
        %988 = vmatpush1.msra.mxu0 0.0
        %989 = vmatprep.subr.mxu0 0.0
        %990 = vmatpush1.msra.mxu0 0.0
        %991 = vmatprep.subr.mxu0 0.0
        %992 = vmatpush1.msra.mxu0 0.0
        %993 = vmatprep.subr.mxu0 0.0
        %994 = vmatpush1.msra.mxu0 0.0
        %995 = vmatprep.subr.mxu0 0.0
        %996 = vmatpush1.msra.mxu0 0.0
        %997 = vmatprep.subr.mxu0 0.0
        %998 = vmatpush1.msra.mxu0 0.0
        %999 = vmatprep.subr.mxu0 0.0
        %1000 = vmatpush1.msra.mxu0 0.0
        %1001 = vmatprep.subr.mxu0 0.0
        %1002 = vmatpush1.msra.mxu0 0.0
        %1003 = vmatprep.subr.mxu0 0.0
        %1004 = vmatpush1.msra.mxu0 0.0
        %1005 = vmatprep.mubr.f32.mxu0 %v852
        %1006 = vmatmul.mubr.f32.gmra.mrb[0].mxu0 %v838
        %v1007 = vpop.f32.mrb[0].mxu0
        %v1008 = vadd.f32 0.0, %v1007
        %v1009 = vpop.f32.mrb[0].mxu0
        %v1010 = vadd.f32 0.0, %v1009
        %1011 = vmatprep.mubr.f32.mxu0 %v854
        %1012 = vmatmul.mubr.f32.gmra.mrb[0].mxu0 %v843
        %v1013 = vpop.f32.mrb[0].mxu0
        %v1014 = vadd.f32 0.0, %v1013
        %v1015 = vpop.f32.mrb[0].mxu0
        %v1016 = vadd.f32 0.0, %v1015
        %1017 = vmatprep.mubr.f32.mxu0 %v856
        %1018 = vmatmul.mubr.f32.gmra.mrb[0].mxu0 %v847
        %v1019 = vpop.f32.mrb[0].mxu0
        %v1020 = vadd.f32 0.0, %v1019
        %v1021 = vpop.f32.mrb[0].mxu0
        %v1022 = vadd.f32 0.0, %v1021
        %1023 = vdwg.mxu0
        %v1024 = vadd.f32 %v656, %v925
        %v1025 = vadd.f32 %v658, %v927
        %v1026 = vadd.f32 %v739, %v1008
        %v1027 = vadd.f32 %v741, %v1010
        %v1028 = vadd.f32 %v662, %v931
        %v1029 = vadd.f32 %v664, %v933
        %v1030 = vadd.f32 %v745, %v1014
        %v1031 = vadd.f32 %v747, %v1016
        %v1032 = vadd.f32 %v668, %v937
        %v1033 = vadd.f32 %v670, %v939
        %v1034 = vadd.f32 %v751, %v1020
        %v1035 = vadd.f32 %v753, %v1022
        %v1036 = vld [vmem:[#allocation5 + $0x780] sm:$0xff]
        %v1037 = vld [vmem:[#allocation5 + $0x788] sm:$0xff]
        %v1038 = vld [vmem:[#allocation5 + $0x790] sm:$0xff]
        %v1039 = vld [vmem:[#allocation5 + $0x798] sm:$0xff]
        %v1040 = vld [vmem:[#allocation5 + $0x7a0] sm:$0xff]
        %v1041 = vld [vmem:[#allocation5 + $0x7a8] sm:$0xff]
        %v1042 = vld [vmem:[#allocation5 + $0x7b0] sm:$0xff]
        %v1043 = vld [vmem:[#allocation5 + $0x7b8] sm:$0xff]
        %v1044 = vld [vmem:[#allocation5 + $0x7c0] sm:$0xff]
        %v1045 = vld [vmem:[#allocation5 + $0x7c8] sm:$0xff]
        %v1046 = vld [vmem:[#allocation5 + $0x7d0] sm:$0xff]
        %v1047 = vld [vmem:[#allocation5 + $0x7d8] sm:$0xff]
        %v1048 = vld [vmem:[#allocation5 + $0x7e0] sm:$0xff]
        %v1049 = vld [vmem:[#allocation5 + $0x7e8] sm:$0xff]
        %v1050 = vld [vmem:[#allocation5 + $0x7f0] sm:$0xff]
        %v1051 = vld [vmem:[#allocation5 + $0x7f8] sm:$0xff]
        %vm1052 = vcmask 1044480
        %v1053 = vrot.slane %v220, 3
        %v1054 = vrot.slane %v222, 3
        %v1055 = vsel %vm1052, %v1053, %v1054
        %v1056 = vrot.slane %v224, 3
        %v1057 = vsel %vm1052, %v1054, %v1056
        %v1058 = vrot.slane 0.0, 3
        %v1059 = vsel %vm1052, %v1056, %v1058
        %v1060 = vsel %vm410, %v1055, 0
        %v1062 = vsel %vm410, %v1057, 0
        %v1064 = vsel %vm410, %v1059, 0
        %1066 = vmatprep.subr.mxu0 %v1037
        %1067 = vmatpush1.msra.mxu0 %v1036
        %1068 = vmatprep.subr.mxu0 %v1041
        %1069 = vmatpush1.msra.mxu0 %v1040
        %1070 = vmatprep.subr.mxu0 %v1045
        %1071 = vmatpush1.msra.mxu0 %v1044
        %1072 = vmatprep.subr.mxu0 %v1049
        %1073 = vmatpush1.msra.mxu0 %v1048
        %1074 = vmatprep.subr.mxu0 0.0
        %1075 = vmatpush1.msra.mxu0 0.0
        %1076 = vmatprep.subr.mxu0 0.0
        %1077 = vmatpush1.msra.mxu0 0.0
        %1078 = vmatprep.subr.mxu0 0.0
        %1079 = vmatpush1.msra.mxu0 0.0
        %1080 = vmatprep.subr.mxu0 0.0
        %1081 = vmatpush1.msra.mxu0 0.0
        %1082 = vmatprep.subr.mxu0 0.0
        %1083 = vmatpush1.msra.mxu0 0.0
        %1084 = vmatprep.subr.mxu0 0.0
        %1085 = vmatpush1.msra.mxu0 0.0
        %1086 = vmatprep.subr.mxu0 0.0
        %1087 = vmatpush1.msra.mxu0 0.0
        %1088 = vmatprep.subr.mxu0 0.0
        %1089 = vmatpush1.msra.mxu0 0.0
        %1090 = vmatprep.subr.mxu0 0.0
        %1091 = vmatpush1.msra.mxu0 0.0
        %1092 = vmatprep.subr.mxu0 0.0
        %1093 = vmatpush1.msra.mxu0 0.0
        %1094 = vmatprep.subr.mxu0 0.0
        %1095 = vmatpush1.msra.mxu0 0.0
        %1096 = vmatprep.subr.mxu0 0.0
        %1097 = vmatpush1.msra.mxu0 0.0
        %1098 = vmatprep.subr.mxu0 0.0
        %1099 = vmatpush1.msra.mxu0 0.0
        %1100 = vmatprep.subr.mxu0 0.0
        %1101 = vmatpush1.msra.mxu0 0.0
        %1102 = vmatprep.subr.mxu0 0.0
        %1103 = vmatpush1.msra.mxu0 0.0
        %1104 = vmatprep.subr.mxu0 0.0
        %1105 = vmatpush1.msra.mxu0 0.0
        %1106 = vmatprep.subr.mxu0 0.0
        %1107 = vmatpush1.msra.mxu0 0.0
        %1108 = vmatprep.subr.mxu0 0.0
        %1109 = vmatpush1.msra.mxu0 0.0
        %1110 = vmatprep.subr.mxu0 0.0
        %1111 = vmatpush1.msra.mxu0 0.0
        %1112 = vmatprep.subr.mxu0 0.0
        %1113 = vmatpush1.msra.mxu0 0.0
        %1114 = vmatprep.subr.mxu0 0.0
        %1115 = vmatpush1.msra.mxu0 0.0
        %1116 = vmatprep.subr.mxu0 0.0
        %1117 = vmatpush1.msra.mxu0 0.0
        %1118 = vmatprep.subr.mxu0 0.0
        %1119 = vmatpush1.msra.mxu0 0.0
        %1120 = vmatprep.subr.mxu0 0.0
        %1121 = vmatpush1.msra.mxu0 0.0
        %1122 = vmatprep.subr.mxu0 0.0
        %1123 = vmatpush1.msra.mxu0 0.0
        %1124 = vmatprep.subr.mxu0 0.0
        %1125 = vmatpush1.msra.mxu0 0.0
        %1126 = vmatprep.subr.mxu0 0.0
        %1127 = vmatpush1.msra.mxu0 0.0
        %1128 = vmatprep.subr.mxu0 0.0
        %1129 = vmatpush1.msra.mxu0 0.0
        %1130 = vmatprep.mubr.f32.mxu0 0.0
        %1131 = vmatmul.mubr.f32.gmra.mrb[0].mxu0 %v1060
        %v1132 = vpop.f32.mrb[0].mxu0
        %v1133 = vadd.f32 0.0, %v1132
        %v1134 = vpop.f32.mrb[0].mxu0
        %v1135 = vadd.f32 0.0, %v1134
        %1136 = vmatprep.mubr.f32.mxu0 0.0
        %1137 = vmatmul.mubr.f32.gmra.mrb[0].mxu0 %v1062
        %v1138 = vpop.f32.mrb[0].mxu0
        %v1139 = vadd.f32 0.0, %v1138
        %v1140 = vpop.f32.mrb[0].mxu0
        %v1141 = vadd.f32 0.0, %v1140
        %1142 = vmatprep.mubr.f32.mxu0 0.0
        %1143 = vmatmul.mubr.f32.gmra.mrb[0].mxu0 %v1064
        %v1144 = vpop.f32.mrb[0].mxu0
        %v1145 = vadd.f32 0.0, %v1144
        %v1146 = vpop.f32.mrb[0].mxu0
        %v1147 = vadd.f32 0.0, %v1146
        %1148 = vdwg.mxu0
        %1149 = vmatprep.subr.mxu0 %v1039
        %1150 = vmatpush1.msra.mxu0 %v1038
        %1151 = vmatprep.subr.mxu0 %v1043
        %1152 = vmatpush1.msra.mxu0 %v1042
        %1153 = vmatprep.subr.mxu0 %v1047
        %1154 = vmatpush1.msra.mxu0 %v1046
        %1155 = vmatprep.subr.mxu0 %v1051
        %1156 = vmatpush1.msra.mxu0 %v1050
        %1157 = vmatprep.subr.mxu0 0.0
        %1158 = vmatpush1.msra.mxu0 0.0
        %1159 = vmatprep.subr.mxu0 0.0
        %1160 = vmatpush1.msra.mxu0 0.0
        %1161 = vmatprep.subr.mxu0 0.0
        %1162 = vmatpush1.msra.mxu0 0.0
        %1163 = vmatprep.subr.mxu0 0.0
        %1164 = vmatpush1.msra.mxu0 0.0
        %1165 = vmatprep.subr.mxu0 0.0
        %1166 = vmatpush1.msra.mxu0 0.0
        %1167 = vmatprep.subr.mxu0 0.0
        %1168 = vmatpush1.msra.mxu0 0.0
        %1169 = vmatprep.subr.mxu0 0.0
        %1170 = vmatpush1.msra.mxu0 0.0
        %1171 = vmatprep.subr.mxu0 0.0
        %1172 = vmatpush1.msra.mxu0 0.0
        %1173 = vmatprep.subr.mxu0 0.0
        %1174 = vmatpush1.msra.mxu0 0.0
        %1175 = vmatprep.subr.mxu0 0.0
        %1176 = vmatpush1.msra.mxu0 0.0
        %1177 = vmatprep.subr.mxu0 0.0
        %1178 = vmatpush1.msra.mxu0 0.0
        %1179 = vmatprep.subr.mxu0 0.0
        %1180 = vmatpush1.msra.mxu0 0.0
        %1181 = vmatprep.subr.mxu0 0.0
        %1182 = vmatpush1.msra.mxu0 0.0
        %1183 = vmatprep.subr.mxu0 0.0
        %1184 = vmatpush1.msra.mxu0 0.0
        %1185 = vmatprep.subr.mxu0 0.0
        %1186 = vmatpush1.msra.mxu0 0.0
        %1187 = vmatprep.subr.mxu0 0.0
        %1188 = vmatpush1.msra.mxu0 0.0
        %1189 = vmatprep.subr.mxu0 0.0
        %1190 = vmatpush1.msra.mxu0 0.0
        %1191 = vmatprep.subr.mxu0 0.0
        %1192 = vmatpush1.msra.mxu0 0.0
        %1193 = vmatprep.subr.mxu0 0.0
        %1194 = vmatpush1.msra.mxu0 0.0
        %1195 = vmatprep.subr.mxu0 0.0
        %1196 = vmatpush1.msra.mxu0 0.0
        %1197 = vmatprep.subr.mxu0 0.0
        %1198 = vmatpush1.msra.mxu0 0.0
        %1199 = vmatprep.subr.mxu0 0.0
        %1200 = vmatpush1.msra.mxu0 0.0
        %1201 = vmatprep.subr.mxu0 0.0
        %1202 = vmatpush1.msra.mxu0 0.0
        %1203 = vmatprep.subr.mxu0 0.0
        %1204 = vmatpush1.msra.mxu0 0.0
        %1205 = vmatprep.subr.mxu0 0.0
        %1206 = vmatpush1.msra.mxu0 0.0
        %1207 = vmatprep.subr.mxu0 0.0
        %1208 = vmatpush1.msra.mxu0 0.0
        %1209 = vmatprep.subr.mxu0 0.0
        %1210 = vmatpush1.msra.mxu0 0.0
        %1211 = vmatprep.subr.mxu0 0.0
        %1212 = vmatpush1.msra.mxu0 0.0
        %1213 = vmatprep.mubr.f32.mxu0 0.0
        %1214 = vmatmul.mubr.f32.gmra.mrb[0].mxu0 %v1060
        %v1215 = vpop.f32.mrb[0].mxu0
        %v1216 = vadd.f32 0.0, %v1215
        %v1217 = vpop.f32.mrb[0].mxu0
        %v1218 = vadd.f32 0.0, %v1217
        %1219 = vmatprep.mubr.f32.mxu0 0.0
        %1220 = vmatmul.mubr.f32.gmra.mrb[0].mxu0 %v1062
        %v1221 = vpop.f32.mrb[0].mxu0
        %v1222 = vadd.f32 0.0, %v1221
        %v1223 = vpop.f32.mrb[0].mxu0
        %v1224 = vadd.f32 0.0, %v1223
        %1225 = vmatprep.mubr.f32.mxu0 0.0
        %1226 = vmatmul.mubr.f32.gmra.mrb[0].mxu0 %v1064
        %v1227 = vpop.f32.mrb[0].mxu0
        %v1228 = vadd.f32 0.0, %v1227
        %v1229 = vpop.f32.mrb[0].mxu0
        %v1230 = vadd.f32 0.0, %v1229
        %1231 = vdwg.mxu0
        %v1232 = vadd.f32 %v1024, %v1133
        %v1233 = vadd.f32 %v1025, %v1135
        %v1234 = vadd.f32 %v1026, %v1216
        %v1235 = vadd.f32 %v1027, %v1218
        %v1236 = vadd.f32 %v1028, %v1139
        %v1237 = vadd.f32 %v1029, %v1141
        %v1238 = vadd.f32 %v1030, %v1222
        %v1239 = vadd.f32 %v1031, %v1224
        %v1240 = vadd.f32 %v1032, %v1145
        %v1241 = vadd.f32 %v1033, %v1147
        %v1242 = vadd.f32 %v1034, %v1228
        %v1243 = vadd.f32 %v1035, %v1230
        %v1244 = vmul.f32 %v1232, %v1232
        %v1245 = vmul.f32 %v1233, %v1233
        %v1246 = vmul.f32 %v1236, %v1236
        %v1247 = vmul.f32 %v1237, %v1237
        %v1248 = vmul.f32 %v1240, %v1240
        %v1249 = vmul.f32 %v1241, %v1241
        %v1250 = vmul.f32 %v1234, %v1234
        %v1251 = vmul.f32 %v1235, %v1235
        %v1252 = vmul.f32 %v1238, %v1238
        %v1253 = vmul.f32 %v1239, %v1239
        %v1254 = vmul.f32 %v1242, %v1242
        %v1255 = vmul.f32 %v1243, %v1243
        %v1256 = vadd.f32 %v1244, %v1250
        %v1257 = vadd.f32 %v1245, %v1251
        %v1258 = vadd.f32 %v1246, %v1252
        %v1259 = vadd.f32 %v1247, %v1253
        %v1260 = vadd.f32 %v1248, %v1254
        %v1261 = vadd.f32 %v1249, %v1255
        %v1262 = vadd.f32 %v1256, 1e-18
        %v1263 = vadd.f32 %v1257, 1e-18
        %v1264 = vadd.f32 %v1258, 1e-18
        %v1265 = vadd.f32 %v1259, 1e-18
        %v1266 = vadd.f32 %v1260, 1e-18
        %v1267 = vadd.f32 %v1261, 1e-18
        %v1268 = vlog2.pop %v1262
        %v1269 = vmul.f32 %v1268, 0.6931472
        %v1270 = vlog2.pop %v1263
        %v1271 = vmul.f32 %v1270, 0.6931472
        %v1272 = vlog2.pop %v1264
        %v1273 = vmul.f32 %v1272, 0.6931472
        %v1274 = vlog2.pop %v1265
        %v1275 = vmul.f32 %v1274, 0.6931472
        %v1276 = vlog2.pop %v1266
        %v1277 = vmul.f32 %v1276, 0.6931472
        %v1278 = vlog2.pop %v1267
        %v1279 = vmul.f32 %v1278, 0.6931472
        %v1280 = vmul.f32 %v1269, 0.5
        %v1281 = vmul.f32 %v1271, 0.5
        %v1282 = vmul.f32 %v1273, 0.5
        %v1283 = vmul.f32 %v1275, 0.5
        %v1284 = vmul.f32 %v1277, 0.5
        %v1285 = vmul.f32 %v1279, 0.5
        %v1286 = vld [vmem:[#allocation7] sm:$0xff]
        %v1287 = vld [vmem:[#allocation7 + $0x8] sm:$0xff]
        %v1288 = vld [vmem:[#allocation7 + $0x10] sm:$0xff]
        %v1289 = vld [vmem:[#allocation7 + $0x18] sm:$0xff]
        %v1290 = vld [vmem:[#allocation7 + $0x20] sm:$0xff]
        %v1291 = vld [vmem:[#allocation7 + $0x28] sm:$0xff]
        %v1292 = vld [vmem:[#allocation7 + $0x30] sm:$0xff]
        %v1293 = vld [vmem:[#allocation7 + $0x38] sm:$0xff]
        %v1294 = vld [vmem:[#allocation7 + $0x40] sm:$0xff]
        %v1295 = vld [vmem:[#allocation7 + $0x48] sm:$0xff]
        %v1296 = vld [vmem:[#allocation7 + $0x50] sm:$0xff]
        %v1297 = vld [vmem:[#allocation7 + $0x58] sm:$0xff]
        %v1298 = vld [vmem:[#allocation7 + $0x60] sm:$0xff]
        %v1299 = vld [vmem:[#allocation7 + $0x68] sm:$0xff]
        %v1300 = vld [vmem:[#allocation7 + $0x70] sm:$0xff]
        %v1301 = vld [vmem:[#allocation7 + $0x78] sm:$0xff]
        %v1302 = vld [vmem:[#allocation7 + $0x80] sm:$0xff]
        %v1303 = vld [vmem:[#allocation7 + $0x88] sm:$0xff]
        %v1304 = vld [vmem:[#allocation7 + $0x90] sm:$0xff]
        %v1305 = vld [vmem:[#allocation7 + $0x98] sm:$0xff]
        %v1306 = vld [vmem:[#allocation7 + $0xa0] sm:$0xff]
        %v1307 = vld [vmem:[#allocation7 + $0xa8] sm:$0xff]
        %v1308 = vld [vmem:[#allocation7 + $0xb0] sm:$0xff]
        %v1309 = vld [vmem:[#allocation7 + $0xb8] sm:$0xff]
        %v1310 = vld [vmem:[#allocation7 + $0xc0] sm:$0xff]
        %v1311 = vld [vmem:[#allocation7 + $0xc8] sm:$0xff]
        %v1312 = vld [vmem:[#allocation7 + $0xd0] sm:$0xff]
        %v1313 = vld [vmem:[#allocation7 + $0xd8] sm:$0xff]
        %v1314 = vld [vmem:[#allocation7 + $0xe0] sm:$0xff]
        %v1315 = vld [vmem:[#allocation7 + $0xe8] sm:$0xff]
        %v1316 = vld [vmem:[#allocation7 + $0xf0] sm:$0xff]
        %v1317 = vld [vmem:[#allocation7 + $0xf8] sm:$0xff]
        %1318 = vmatprep.subr.mxu0 0.0
        %1319 = vmatpush1.msra.mxu0 %v1286
        %1320 = vmatprep.subr.mxu0 0.0
        %1321 = vmatpush1.msra.mxu0 %v1287
        %1322 = vmatprep.subr.mxu0 0.0
        %1323 = vmatpush1.msra.mxu0 %v1288
        %1324 = vmatprep.subr.mxu0 0.0
        %1325 = vmatpush1.msra.mxu0 %v1289
        %1326 = vmatprep.subr.mxu0 0.0
        %1327 = vmatpush1.msra.mxu0 %v1290
        %1328 = vmatprep.subr.mxu0 0.0
        %1329 = vmatpush1.msra.mxu0 %v1291
        %1330 = vmatprep.subr.mxu0 0.0
        %1331 = vmatpush1.msra.mxu0 %v1292
        %1332 = vmatprep.subr.mxu0 0.0
        %1333 = vmatpush1.msra.mxu0 %v1293
        %1334 = vmatprep.subr.mxu0 0.0
        %1335 = vmatpush1.msra.mxu0 %v1294
        %1336 = vmatprep.subr.mxu0 0.0
        %1337 = vmatpush1.msra.mxu0 %v1295
        %1338 = vmatprep.subr.mxu0 0.0
        %1339 = vmatpush1.msra.mxu0 %v1296
        %1340 = vmatprep.subr.mxu0 0.0
        %1341 = vmatpush1.msra.mxu0 %v1297
        %1342 = vmatprep.subr.mxu0 0.0
        %1343 = vmatpush1.msra.mxu0 %v1298
        %1344 = vmatprep.subr.mxu0 0.0
        %1345 = vmatpush1.msra.mxu0 %v1299
        %1346 = vmatprep.subr.mxu0 0.0
        %1347 = vmatpush1.msra.mxu0 %v1300
        %1348 = vmatprep.subr.mxu0 0.0
        %1349 = vmatpush1.msra.mxu0 %v1301
        %1350 = vmatprep.subr.mxu0 0.0
        %1351 = vmatpush1.msra.mxu0 %v1302
        %1352 = vmatprep.subr.mxu0 0.0
        %1353 = vmatpush1.msra.mxu0 %v1303
        %1354 = vmatprep.subr.mxu0 0.0
        %1355 = vmatpush1.msra.mxu0 %v1304
        %1356 = vmatprep.subr.mxu0 0.0
        %1357 = vmatpush1.msra.mxu0 %v1305
        %1358 = vmatprep.subr.mxu0 0.0
        %1359 = vmatpush1.msra.mxu0 %v1306
        %1360 = vmatprep.subr.mxu0 0.0
        %1361 = vmatpush1.msra.mxu0 %v1307
        %1362 = vmatprep.subr.mxu0 0.0
        %1363 = vmatpush1.msra.mxu0 %v1308
        %1364 = vmatprep.subr.mxu0 0.0
        %1365 = vmatpush1.msra.mxu0 %v1309
        %1366 = vmatprep.subr.mxu0 0.0
        %1367 = vmatpush1.msra.mxu0 %v1310
        %1368 = vmatprep.subr.mxu0 0.0
        %1369 = vmatpush1.msra.mxu0 %v1311
        %1370 = vmatprep.subr.mxu0 0.0
        %1371 = vmatpush1.msra.mxu0 %v1312
        %1372 = vmatprep.subr.mxu0 0.0
        %1373 = vmatpush1.msra.mxu0 %v1313
        %1374 = vmatprep.subr.mxu0 0.0
        %1375 = vmatpush1.msra.mxu0 %v1314
        %1376 = vmatprep.subr.mxu0 0.0
        %1377 = vmatpush1.msra.mxu0 %v1315
        %1378 = vmatprep.subr.mxu0 0.0
        %1379 = vmatpush1.msra.mxu0 %v1316
        %1380 = vmatprep.subr.mxu0 0.0
        %1381 = vmatpush1.msra.mxu0 %v1317
        %1382 = vmatprep.mubr.f32.mxu0 %v1281
        %1383 = vmatmul.mubr.f32.gmra.mrb[0].mxu0 %v1280
        %v1384 = vpop.f32.mrb[0].mxu0
        %v1385 = vadd.f32 0.0, %v1384
        %v1386 = vpop.f32.mrb[0].mxu0
        %1387 = vmatprep.mubr.f32.mxu0 %v1283
        %1388 = vmatmul.mubr.f32.gmra.mrb[0].mxu0 %v1282
        %v1389 = vpop.f32.mrb[0].mxu0
        %v1390 = vadd.f32 0.0, %v1389
        %v1391 = vpop.f32.mrb[0].mxu0
        %1392 = vmatprep.mubr.f32.mxu0 %v1285
        %1393 = vmatmul.mubr.f32.gmra.mrb[0].mxu0 %v1284
        %v1394 = vpop.f32.mrb[0].mxu0
        %v1395 = vadd.f32 0.0, %v1394
        %v1396 = vpop.f32.mrb[0].mxu0
        %1397 = vdwg.mxu0
        %v1398 = vlaneseq
        %v1399 = vshrl.u32 %v1398, 7
        %v1400 = vadd.s32 %v1399, 8
        %v1401 = vadd.s32 %v1399, 16
        %vm1402 = vcmp.lt.s32.totalorder %v1399, 11
        %vm1403 = vcmp.lt.s32.totalorder %v1400, 11
        %vm1404 = vcmp.lt.s32.totalorder %v1401, 11
        %v1405 = vsel %vm1402, 1, 0
        %v1406 = vsel %vm1403, 1, 0
        %v1407 = vsel %vm1404, 1, 0
        %v1408 = vcvt.s32.f32 %v1405
        %v1409 = vcvt.s32.f32 %v1406
        %v1410 = vcvt.s32.f32 %v1407
        %v1411 = vmul.f32 %v1385, %v1408
        %v1412 = vmul.f32 %v1390, %v1409
        %v1413 = vmul.f32 %v1395, %v1410
        %v1414 = vadd.f32 %v1411, %v1412
        %v1415 = vadd.f32 %v1414, %v1413
        %v1416 = vrot.slane %v1415, 4
        %v1417 = vadd.f32 %v1415, %v1416
        %v1418 = vrot.slane %v1417, 2
        %v1419 = vadd.f32 %v1417, %v1418
        %v1420 = vrot.slane %v1419, 1
        %v1421 = vadd.f32 %v1419, %v1420
        %v1422 = vmul.f32 %v1421, 0.09090909
        %v1423 = vmul.f32 %v1411, %v1385
        %v1424 = vmul.f32 %v1412, %v1390
        %v1425 = vmul.f32 %v1413, %v1395
        %v1426 = vadd.f32 %v1423, %v1424
        %v1427 = vadd.f32 %v1426, %v1425
        %v1428 = vrot.slane %v1427, 4
        %v1429 = vadd.f32 %v1427, %v1428
        %v1430 = vrot.slane %v1429, 2
        %v1431 = vadd.f32 %v1429, %v1430
        %v1432 = vrot.slane %v1431, 1
        %v1433 = vadd.f32 %v1431, %v1432
        %v1434 = vmul.f32 %v1433, 0.09090909
        %v1435 = vmul.f32 %v1422, %v1422
        %v1436 = vsub.f32 %v1434, %v1435
        %v1437 = vmax.f32 %v1436, 0.0
        %v1438 = vsub.f32 %v1385, %v1422
        %v1439 = vsub.f32 %v1390, %v1422
        %v1440 = vsub.f32 %v1395, %v1422
        %v1441 = vadd.f32 %v1437, 1e-05
        %v1442 = vrsqrt.pop %v1441
        %v1443 = vmul.f32 %v1438, %v1442
        %v1444 = vmul.f32 %v1439, %v1442
        %v1445 = vmul.f32 %v1440, %v1442
        %1446 = vst [vmem:[%s218] sm:$0xff] %v1443
        %1447 = vst [vmem:[%s218 + $0x8] sm:$0xff] %v1444
        %1448 = vst [vmem:[%s218 + $0x10] sm:$0xff] %v1445
        %s1449 = sand.u32 %s97, 1
        %s1450 = scalar_lea.sflag [#allocation4], %s1449
        %s1451 = sand.u32 %s97, 1
        %s1452 = smul.addr %s1451, 24
        %s1453 = scalar_lea.vmem [#allocation8], %s1452
        // Predicated region
        $region45: #{tpu_custom_call.1} parent=31 // pred_check
          %p1454 = pneg %p107
        $region46: #{tpu_custom_call.1} parent=31 // pred_check_branch
          %1456 = sbr.rel (%p1454) target = $region48
        $region47: #{tpu_custom_call.1} parent=31 // pred_region
          %s1458 = ssub.s32 384, 384
          %1459 = vsyncadd %s1450, %s1458
          %s1460 = smul.addr %s21, 3
          %s1461 = smul.addr %s1460, 128
          %s1462 = scalar_lea.hbm %s3, %s1461
          %s1463 = sshll.u32 %s1453, 4
          %s1464 = int_to_ptr.vmem [resolvable:$true] %s1463
          %1469 = dma.vmem_to_hbm [thread:$0]  %s1464, 384, %s1462, %s1450, 128, 128, 8
        $region48: #{tpu_custom_call.1} parent=31 // pred_fallthru
          _
      $region32: #{tpu_custom_call.1} parent=5 // pred_fallthru
        _
      %p1470 = scmp.le.s32.totalorder 2, %s16
      // Predicated region
      $region49: #{tpu_custom_call.1} parent=5 // pred_check
        %p1471 = pneg %p1470
      $region50: #{tpu_custom_call.1} parent=5 // pred_check_branch
        %1473 = sbr.rel (%p1471) target = $region52
      $region51: #{tpu_custom_call.1} parent=5 // pred_region
        %s1474 = ssub.s32 %s16, 2
        // Predicated region
        $region53: #{tpu_custom_call.1} parent=51 // pred_check
          %p1475 = pneg %p113
        $region54: #{tpu_custom_call.1} parent=51 // pred_check_branch
          %1477 = sbr.rel (%p1475) target = $region56
        $region55: #{tpu_custom_call.1} parent=51 // pred_region
          %s1478 = sand.u32 %s98, 1
          %s1479 = scalar_lea.sflag [#allocation4], %s1478
          %s1480 = sand.u32 %s98, 1
          %s1481 = smul.addr %s1480, 24
          %s1482 = scalar_lea.vmem [#allocation8], %s1481
          %1483 = dma.done %s1479, 384
        $region56: #{tpu_custom_call.1} parent=51 // pred_fallthru
          _
      $region52: #{tpu_custom_call.1} parent=5 // pred_fallthru
        _
    $region6: #{tpu_custom_call.1} parent=1 // loop_footer
      %s20 = sadd.s32 1, %s16
    $region7: #{tpu_custom_call.1} parent=1 // loop_footer_branch
      %15 = sbr.rel target = $region3
    $region8: #{tpu_custom_call.1} parent=1 // loop_exit
      _
    %1484 = vsyncpa [#allocation3], 1
    %s1485 = scalar_lea.sflag [#allocation3], 1
    %1486 = vsyncpa %s1485, 1
    %1487 = vsyncpa [#allocation6], 1
    %1488 = vsyncpa [#allocation4], 1
    %s1489 = scalar_lea.sflag [#allocation4], 1
    %1490 = vsyncpa %s1489, 1

</llo_original>
